<compile_context>
chip_gen: v7x
topology: tpu7x:2x2x1
jax: 0.10.0
libtpu: 0.0.40
codegen_flags: <defaults>
</compile_context>

<pallas_src>
import collections

import jax
import jax.numpy as jnp
from jax.experimental import pallas as pl
from jax.experimental.pallas import tpu as pltpu


# ----------------------------------------------------------------------------
# Helpers
# ----------------------------------------------------------------------------
def _pick_wide_width(H, W):
    """Smallest Wp >= W+2 such that L = H*Wp is a multiple of 128 (lane-dense)."""
    base = W + 2
    for wp in range(base, base + 129):
        if (H * wp) % 128 == 0:
            return wp
    return base


def _choose_batch_block(N, max_block=4):
    """Images per grid step; keep >= 2 parallel grid steps when N >= 2 (v7x)."""
    if N <= 1:
        return 1
    bb = max(1, min(max_block, N // 2))
    while N % bb:
        bb -= 1
    return max(bb, 1)


# ----------------------------------------------------------------------------
# Fused multi-stage conv3x3+ReLU kernel (everything stays in VMEM)
# ----------------------------------------------------------------------------
def _make_fused_kernel(layer_channels, return_positions, B_blk, C0, Wp, L,
                       SEG, PAD0, C_MAX, out_dtype):
    """Builds the fused kernel body.

    Ref order:
      mask_ref : (1, B_blk*L) f32   1.0 where (flat col % Wp) < W else 0.0
      x_ref    : (B_blk, C0, L) bf16  width-padded, row-flattened input images
      per layer l: w_ref_l (C_out, 9*C_in) bf16, b_ref_l (C_out, 1) f32
      one out_ref (B_blk, C_out_l, L) bf16 per returned layer (layer order)
      scr      : (C_MAX, B_blk*SEG) bf16 persistent activation scratch.
    """
    num_layers = len(layer_channels)
    return_positions = tuple(return_positions)
    n_in = 2 + 2 * num_layers
    n_out = len(return_positions)
    BASE = PAD0 - (Wp + 1)                      # flat offset of padded pixel (0,0)
    tap_offsets = tuple(kh * Wp + kw for kh in range(3) for kw in range(3))

    def kernel(*refs):
        mask_ref = refs[0]
        x_ref = refs[1]
        layer_refs = refs[2:n_in]
        out_refs = refs[n_in:n_in + n_out]
        scr = refs[n_in + n_out]

        mask = mask_ref[...]                    # (1, B_blk*L) f32

        # Re-zero the padding rings (128-lane-aligned stores, tiny), then drop
        # this grid step's input images into the activation slots of the
        # persistent VMEM scratch.  Rows above the live channel count are
        # stale but never read.
        zero_pre = jnp.zeros((C_MAX, PAD0), jnp.bfloat16)
        zero_post = jnp.zeros((C_MAX, SEG - PAD0 - L), jnp.bfloat16)
        for b in range(B_blk):
            scr[:, b * SEG: b * SEG + PAD0] = zero_pre
            scr[:, b * SEG + PAD0 + L: (b + 1) * SEG] = zero_post
            scr[:C0, b * SEG + PAD0: b * SEG + PAD0 + L] = x_ref[b]

        oi = 0
        for l, (c_in, c_out) in enumerate(layer_channels):
            w = layer_refs[2 * l][...]          # (c_out, 9*c_in) bf16
            bias = layer_refs[2 * l + 1][...]   # (c_out, 1) f32

            # conv3x3(pad=1) as a SINGLE matmul: stack the 9 lane-shifted
            # views of the scratch-resident activation along K (im2col).
            taps = []
            for off in tap_offsets:
                parts = [
                    scr[:c_in, b * SEG + BASE + off: b * SEG + BASE + off + L]
                    for b in range(B_blk)
                ]
                taps.append(parts[0] if B_blk == 1
                            else jnp.concatenate(parts, axis=1))
            im2col = jnp.concatenate(taps, axis=0)      # (9*c_in, B_blk*L) bf16

            acc = jnp.dot(w, im2col,
                          preferred_element_type=jnp.float32)  # (c_out, B_blk*L)
            act = jnp.maximum(acc + bias, 0.0)                 # f32 (VPU, stays f32)

            # Junk columns must be zero so they act as the zero-padding ring
            # of the next stage; the last layer's junk is sliced away in XLA.
            if l + 1 < num_layers:
                act = act * mask

            if l in return_positions:
                for b in range(B_blk):
                    out_refs[oi][b, :, :] = (
                        act[:, b * L:(b + 1) * L].astype(out_dtype))
                oi += 1

            if l + 1 < num_layers:
                act_bf = act.astype(jnp.bfloat16)
                for b in range(B_blk):
                    # 128-lane-aligned store into the pre-zeroed scratch.
                    scr[:c_out, b * SEG + PAD0: b * SEG + PAD0 + L] = (
                        act_bf[:, b * L:(b + 1) * L])

    return kernel


def fused_backbone_forward(x, params, return_layers, batch_block=4):
    """x: (N, C0, H, W) f32; params: OrderedDict name -> (w (Co,Ci,3,3), b (Co,))."""
    N, C0, H, W = x.shape
    Wp = _pick_wide_width(H, W)          # wide row width (>= W+2, L % 128 == 0)
    L = H * Wp                           # flat "wide" row length per image
    PAD0 = 128 * (-(-(Wp + 1) // 128))   # aligned zero-prefix (>= Wp+1)
    PAD1 = PAD0                          # aligned zero-suffix
    SEG = PAD0 + L + PAD1                # per-image segment in the scratch
    B_blk = _choose_batch_block(N, batch_block)
    BL = B_blk * L

    # TEE_IntermediateLayerGetter semantics: keep children in order, stop once
    # every requested layer has been collected.
    names = list(params.keys())
    if not set(return_layers).issubset(set(names)):
        raise ValueError("return_layers are not present in model")
    last = max(i for i, n in enumerate(names) if n in return_layers)
    names = names[:last + 1]

    # Width-pad to Wp (zeros on the right), flatten rows, bf16 MXU operand.
    x_wide = jnp.pad(x, ((0, 0), (0, 0), (0, 0), (0, Wp - W)))
    x_wide = x_wide.reshape(N, C0, L).astype(jnp.bfloat16)

    # Columns with (flat index % Wp) >= W are shift-trick junk -> masked to 0.
    mask = ((jnp.arange(L, dtype=jnp.int32) % Wp) < W).astype(jnp.float32)
    mask = jnp.tile(mask, (B_blk,)).reshape(1, BL)

    call_args = [mask, x_wide]
    in_specs = [
        pl.BlockSpec((1, BL), lambda nb: (0, 0)),
        pl.BlockSpec((B_blk, C0, L), lambda nb: (nb, 0, 0)),
    ]
    out_shapes, out_specs = [], []
    layer_channels = []
    return_positions, return_names, return_channels = [], [], []
    flops = 0
    bytes_accessed = mask.size * 4 + x_wide.size * 2

    for idx, name in enumerate(names):
        w, bvec = params[name]
        c_out, c_in = int(w.shape[0]), int(w.shape[1])
        layer_channels.append((c_in, c_out))
        # (C_out, C_in, 3, 3) -> (C_out, 9*C_in); K index = (kh*3+kw)*C_in + ci
        # to match the im2col row order built in the kernel.
        w_flat = jnp.transpose(w, (0, 2, 3, 1)).reshape(c_out, 9 * c_in)
        w_flat = w_flat.astype(jnp.bfloat16)
        b_col = bvec.reshape(c_out, 1).astype(jnp.float32)
        call_args += [w_flat, b_col]
        in_specs += [
            pl.BlockSpec((c_out, 9 * c_in), lambda nb: (0, 0)),
            pl.BlockSpec((c_out, 1), lambda nb: (0, 0)),
        ]
        flops += 2 * N * L * 9 * c_in * c_out
        bytes_accessed += w_flat.size * 2 + b_col.size * 4
        if name in return_layers:
            return_positions.append(idx)
            return_names.append(return_layers[name])
            return_channels.append(c_out)
            out_shapes.append(jax.ShapeDtypeStruct((N, c_out, L), jnp.bfloat16))
            out_specs.append(pl.BlockSpec((B_blk, c_out, L),
                                          lambda nb: (nb, 0, 0)))
            bytes_accessed += N * c_out * L * 2

    C_MAX = max(C0, max(max(ci, co) for ci, co in layer_channels))

    kernel = _make_fused_kernel(layer_channels, return_positions, B_blk, C0,
                                Wp, L, SEG, PAD0, C_MAX, jnp.bfloat16)

    outs = pl.pallas_call(
        kernel,
        out_shape=tuple(out_shapes),
        grid_spec=pltpu.PrefetchScalarGridSpec(
            num_scalar_prefetch=0,
            grid=(N // B_blk,),
            in_specs=in_specs,
            out_specs=tuple(out_specs),
            scratch_shapes=[pltpu.VMEM((C_MAX, B_blk * SEG), jnp.bfloat16)],
        ),
        compiler_params=pltpu.CompilerParams(
            dimension_semantics=("parallel",),
        ),
        cost_estimate=pl.CostEstimate(
            flops=flops, transcendentals=0, bytes_accessed=bytes_accessed),
    )(*call_args)
    if not isinstance(outs, (tuple, list)):
        outs = (outs,)

    result = collections.OrderedDict()
    for out_name, c_out, wide in zip(return_names, return_channels, outs):
        # (N, C_out, H*Wp) bf16 -> f32, drop junk columns -> NCHW (tiny XLA op).
        feat = wide.astype(jnp.float32).reshape(N, c_out, H, Wp)[:, :, :, :W]
        result[out_name] = feat
    return result


# ----------------------------------------------------------------------------
# Synthetic backbone + TEE_Backbone forward semantics
# ----------------------------------------------------------------------------
def make_backbone_params(key, channels=(4, 8, 16, 32)):
    params = collections.OrderedDict()
    for idx in range(len(channels) - 1):
        c_in, c_out = channels[idx], channels[idx + 1]
        key, kw, kb = jax.random.split(key, 3)
        w = jax.random.normal(kw, (c_out, c_in, 3, 3), jnp.float32) * 0.1
        b = jax.random.normal(kb, (c_out,), jnp.float32) * 0.01
        params[f"layer{idx + 1}"] = (w, b)
    return params


class TEEBackbonePallas:
    """Mirrors TEE_Backbone.forward: run the backbone's children in order and
    collect the activations named in return_layers into an OrderedDict.  The
    whole child-loop executes inside one fused Pallas kernel."""

    def __init__(self, params, return_layers, out_channels):
        self.params = params                    # OrderedDict name -> (w, b)
        self.return_layers = dict(return_layers)
        self.out_channels = out_channels
        self._forward = jax.jit(
            lambda x: fused_backbone_forward(x, self.params, self.return_layers))

    def __call__(self, x):
        return self._forward(x)


def _reference_forward(x, params, return_layers):
    """Pure-JAX (XLA) reference of the same backbone for a correctness check."""
    out = collections.OrderedDict()
    for name, (w, b) in params.items():
        x = jax.lax.conv_general_dilated(
            x, w, window_strides=(1, 1), padding=((1, 1), (1, 1)),
            dimension_numbers=("NCHW", "OIHW", "NCHW"))
        x = jnp.maximum(x + b.reshape(1, -1, 1, 1), 0.0)
        if name in return_layers:
            out[return_layers[name]] = x
    return out


if __name__ == "__main__":
    key = jax.random.PRNGKey(0)
    key, kx = jax.random.split(key)

    N, C, H, W = 2, 4, 16, 16
    x = jax.random.normal(kx, (N, C, H, W), jnp.float32)

    params = make_backbone_params(key, channels=(4, 8, 16, 32))
    return_layers = {"layer2": "0", "layer3": "1"}
    backbone = TEEBackbonePallas(params, return_layers, out_channels=32)

    out = backbone(x)
    jax.block_until_ready(out)

    assert list(out.keys()) == ["0", "1"]
    assert out["0"].shape == (N, 16, H, W)
    assert out["1"].shape == (N, 32, H, W)

    # Numerical cross-check vs XLA reference (bf16 MXU operands / activations /
    # outputs, f32 accumulation -> loose tolerance).
    ref = _reference_forward(x, params, return_layers)
    for k in out:
        err = float(jnp.max(jnp.abs(out[k] - ref[k])))
        assert bool(jnp.allclose(out[k], ref[k], rtol=7e-2, atol=7e-2)), (k, err)

    print("KERNEL_OK")
</pallas_src>

<mosaic_0001>
module attributes {stable_mosaic.version = 11 : i64} {
  func.func @kernel(%arg0: i32, %arg1: memref<1x384xf32, #tpu.memory_space<vmem>>, %arg2: memref<1x4x384xbf16, #tpu.memory_space<vmem>>, %arg3: memref<8x36xbf16, #tpu.memory_space<vmem>>, %arg4: memref<8x1xf32, #tpu.memory_space<vmem>>, %arg5: memref<16x72xbf16, #tpu.memory_space<vmem>>, %arg6: memref<16x1xf32, #tpu.memory_space<vmem>>, %arg7: memref<32x144xbf16, #tpu.memory_space<vmem>>, %arg8: memref<32x1xf32, #tpu.memory_space<vmem>>, %arg9: memref<1x16x384xbf16, #tpu.memory_space<vmem>>, %arg10: memref<1x32x384xbf16, #tpu.memory_space<vmem>>, %arg11: memref<32x640xbf16, #tpu.memory_space<vmem>>) attributes {dimension_semantics = [#tpu.dimension_semantics<parallel>], iteration_bounds = array<i64: 2>, scalar_prefetch = 0 : i64, scratch_operands = 1 : i64, tpu.core_type = #tpu.core_type<tc>, window_params = [{pipeline_mode = #tpu.pipeline_mode<synchronous>, transform_indices = @transform_0, window_bounds = array<i64: 1, 384>}, {transform_indices = @transform_1, window_bounds = array<i64: 1, 4, 384>}, {pipeline_mode = #tpu.pipeline_mode<synchronous>, transform_indices = @transform_2, window_bounds = array<i64: 8, 36>}, {pipeline_mode = #tpu.pipeline_mode<synchronous>, transform_indices = @transform_3, window_bounds = array<i64: 8, 1>}, {pipeline_mode = #tpu.pipeline_mode<synchronous>, transform_indices = @transform_4, window_bounds = array<i64: 16, 72>}, {pipeline_mode = #tpu.pipeline_mode<synchronous>, transform_indices = @transform_5, window_bounds = array<i64: 16, 1>}, {pipeline_mode = #tpu.pipeline_mode<synchronous>, transform_indices = @transform_6, window_bounds = array<i64: 32, 144>}, {pipeline_mode = #tpu.pipeline_mode<synchronous>, transform_indices = @transform_7, window_bounds = array<i64: 32, 1>}, {transform_indices = @transform_8, window_bounds = array<i64: 1, 16, 384>}, {transform_indices = @transform_9, window_bounds = array<i64: 1, 32, 384>}]} {
    %c0 = arith.constant 0 : index
    %c0_0 = arith.constant 0 : index
    %0 = vector.load %arg1[%c0, %c0_0] : memref<1x384xf32, #tpu.memory_space<vmem>>, vector<1x384xf32>
    %cst = arith.constant 0.000000e+00 : bf16
    %1 = vector.broadcast %cst : bf16 to vector<32x128xbf16>
    %cst_1 = arith.constant 0.000000e+00 : bf16
    %2 = vector.broadcast %cst_1 : bf16 to vector<32x128xbf16>
    %c0_2 = arith.constant 0 : index
    %c0_3 = arith.constant 0 : index
    %3 = vector.load %arg11[%c0_2, %c0_3] : memref<32x640xbf16, #tpu.memory_space<vmem>>, vector<32x128xbf16>
    tpu.vector_store %arg11[%c0_2, %c0_3], %1 {strides = array<i32>} : memref<32x640xbf16, #tpu.memory_space<vmem>>, vector<32x128xbf16>,
    %c0_4 = arith.constant 0 : index
    %c512 = arith.constant 512 : index
    %4 = vector.load %arg11[%c0_4, %c512] : memref<32x640xbf16, #tpu.memory_space<vmem>>, vector<32x128xbf16>
    tpu.vector_store %arg11[%c0_4, %c512], %2 {strides = array<i32>} : memref<32x640xbf16, #tpu.memory_space<vmem>>, vector<32x128xbf16>,
    %c0_5 = arith.constant 0 : index
    %c0_6 = arith.constant 0 : index
    %c0_7 = arith.constant 0 : index
    %5 = vector.load %arg2[%c0_5, %c0_6, %c0_7] : memref<1x4x384xbf16, #tpu.memory_space<vmem>>, vector<1x4x384xbf16>
    %6 = vector.shape_cast %5 : vector<1x4x384xbf16> to vector<4x384xbf16>
    %c0_8 = arith.constant 0 : index
    %c128 = arith.constant 128 : index
    %7 = vector.load %arg11[%c0_8, %c128] : memref<32x640xbf16, #tpu.memory_space<vmem>>, vector<4x384xbf16>
    tpu.vector_store %arg11[%c0_8, %c128], %6 {strides = array<i32>} : memref<32x640xbf16, #tpu.memory_space<vmem>>, vector<4x384xbf16>,
    %c0_9 = arith.constant 0 : index
    %c0_10 = arith.constant 0 : index
    %8 = vector.load %arg3[%c0_9, %c0_10] : memref<8x36xbf16, #tpu.memory_space<vmem>>, vector<8x36xbf16>
    %c0_11 = arith.constant 0 : index
    %c0_12 = arith.constant 0 : index
    %9 = vector.load %arg4[%c0_11, %c0_12] : memref<8x1xf32, #tpu.memory_space<vmem>>, vector<8x1xf32>
    %c0_13 = arith.constant 0 : index
    %c103 = arith.constant 103 : index
    %10 = vector.load %arg11[%c0_13, %c103] : memref<32x640xbf16, #tpu.memory_space<vmem>>, vector<4x384xbf16>
    %c0_14 = arith.constant 0 : index
    %c104 = arith.constant 104 : index
    %11 = vector.load %arg11[%c0_14, %c104] : memref<32x640xbf16, #tpu.memory_space<vmem>>, vector<4x384xbf16>
    %c0_15 = arith.constant 0 : index
    %c105 = arith.constant 105 : index
    %12 = vector.load %arg11[%c0_15, %c105] : memref<32x640xbf16, #tpu.memory_space<vmem>>, vector<4x384xbf16>
    %c0_16 = arith.constant 0 : index
    %c127 = arith.constant 127 : index
    %13 = vector.load %arg11[%c0_16, %c127] : memref<32x640xbf16, #tpu.memory_space<vmem>>, vector<4x384xbf16>
    %c0_17 = arith.constant 0 : index
    %c128_18 = arith.constant 128 : index
    %14 = vector.load %arg11[%c0_17, %c128_18] : memref<32x640xbf16, #tpu.memory_space<vmem>>, vector<4x384xbf16>
    %c0_19 = arith.constant 0 : index
    %c129 = arith.constant 129 : index
    %15 = vector.load %arg11[%c0_19, %c129] : memref<32x640xbf16, #tpu.memory_space<vmem>>, vector<4x384xbf16>
    %c0_20 = arith.constant 0 : index
    %c151 = arith.constant 151 : index
    %16 = vector.load %arg11[%c0_20, %c151] : memref<32x640xbf16, #tpu.memory_space<vmem>>, vector<4x384xbf16>
    %c0_21 = arith.constant 0 : index
    %c152 = arith.constant 152 : index
    %17 = vector.load %arg11[%c0_21, %c152] : memref<32x640xbf16, #tpu.memory_space<vmem>>, vector<4x384xbf16>
    %c0_22 = arith.constant 0 : index
    %c153 = arith.constant 153 : index
    %18 = vector.load %arg11[%c0_22, %c153] : memref<32x640xbf16, #tpu.memory_space<vmem>>, vector<4x384xbf16>
    %19 = tpu.concatenate %10, %11, %12, %13, %14, %15, %16, %17, %18 in 0 : vector<4x384xbf16>, vector<4x384xbf16>, vector<4x384xbf16>, vector<4x384xbf16>, vector<4x384xbf16>, vector<4x384xbf16>, vector<4x384xbf16>, vector<4x384xbf16>, vector<4x384xbf16> -> vector<36x384xbf16>
    %cst_23 = arith.constant dense<0.000000e+00> : vector<8x384xf32>
    %20 = tpu.matmul %8, %19, %cst_23 {dimension_numbers = #tpu.dot_dimension_numbers<[1], [0], [0], [1], [0, 0, 1, 1], [], []>} : vector<8x36xbf16>, vector<36x384xbf16>, vector<8x384xf32> -> vector<8x384xf32>
    %21 = vector.broadcast %9 : vector<8x1xf32> to vector<8x384xf32>
    %22 = arith.addf %20, %21 : vector<8x384xf32>
    %cst_24 = arith.constant 0.000000e+00 : f32
    %23 = vector.broadcast %cst_24 : f32 to vector<8x384xf32>
    %24 = arith.maximumf %22, %23 : vector<8x384xf32>
    %25 = vector.broadcast %0 : vector<1x384xf32> to vector<8x384xf32>
    %26 = arith.mulf %24, %25 : vector<8x384xf32>
    %27 = arith.truncf %26 : vector<8x384xf32> to vector<8x384xbf16>
    %c0_25 = arith.constant 0 : index
    %c128_26 = arith.constant 128 : index
    %28 = vector.load %arg11[%c0_25, %c128_26] : memref<32x640xbf16, #tpu.memory_space<vmem>>, vector<8x384xbf16>
    tpu.vector_store %arg11[%c0_25, %c128_26], %27 {strides = array<i32>} : memref<32x640xbf16, #tpu.memory_space<vmem>>, vector<8x384xbf16>,
    %c0_27 = arith.constant 0 : index
    %c0_28 = arith.constant 0 : index
    %29 = vector.load %arg5[%c0_27, %c0_28] : memref<16x72xbf16, #tpu.memory_space<vmem>>, vector<16x72xbf16>
    %c0_29 = arith.constant 0 : index
    %c0_30 = arith.constant 0 : index
    %30 = vector.load %arg6[%c0_29, %c0_30] : memref<16x1xf32, #tpu.memory_space<vmem>>, vector<16x1xf32>
    %c0_31 = arith.constant 0 : index
    %c103_32 = arith.constant 103 : index
    %31 = vector.load %arg11[%c0_31, %c103_32] : memref<32x640xbf16, #tpu.memory_space<vmem>>, vector<8x384xbf16>
    %c0_33 = arith.constant 0 : index
    %c104_34 = arith.constant 104 : index
    %32 = vector.load %arg11[%c0_33, %c104_34] : memref<32x640xbf16, #tpu.memory_space<vmem>>, vector<8x384xbf16>
    %c0_35 = arith.constant 0 : index
    %c105_36 = arith.constant 105 : index
    %33 = vector.load %arg11[%c0_35, %c105_36] : memref<32x640xbf16, #tpu.memory_space<vmem>>, vector<8x384xbf16>
    %c0_37 = arith.constant 0 : index
    %c127_38 = arith.constant 127 : index
    %34 = vector.load %arg11[%c0_37, %c127_38] : memref<32x640xbf16, #tpu.memory_space<vmem>>, vector<8x384xbf16>
    %c0_39 = arith.constant 0 : index
    %c128_40 = arith.constant 128 : index
    %35 = vector.load %arg11[%c0_39, %c128_40] : memref<32x640xbf16, #tpu.memory_space<vmem>>, vector<8x384xbf16>
    %c0_41 = arith.constant 0 : index
    %c129_42 = arith.constant 129 : index
    %36 = vector.load %arg11[%c0_41, %c129_42] : memref<32x640xbf16, #tpu.memory_space<vmem>>, vector<8x384xbf16>
    %c0_43 = arith.constant 0 : index
    %c151_44 = arith.constant 151 : index
    %37 = vector.load %arg11[%c0_43, %c151_44] : memref<32x640xbf16, #tpu.memory_space<vmem>>, vector<8x384xbf16>
    %c0_45 = arith.constant 0 : index
    %c152_46 = arith.constant 152 : index
    %38 = vector.load %arg11[%c0_45, %c152_46] : memref<32x640xbf16, #tpu.memory_space<vmem>>, vector<8x384xbf16>
    %c0_47 = arith.constant 0 : index
    %c153_48 = arith.constant 153 : index
    %39 = vector.load %arg11[%c0_47, %c153_48] : memref<32x640xbf16, #tpu.memory_space<vmem>>, vector<8x384xbf16>
    %40 = tpu.concatenate %31, %32, %33, %34, %35, %36, %37, %38, %39 in 0 : vector<8x384xbf16>, vector<8x384xbf16>, vector<8x384xbf16>, vector<8x384xbf16>, vector<8x384xbf16>, vector<8x384xbf16>, vector<8x384xbf16>, vector<8x384xbf16>, vector<8x384xbf16> -> vector<72x384xbf16>
    %cst_49 = arith.constant dense<0.000000e+00> : vector<16x384xf32>
    %41 = tpu.matmul %29, %40, %cst_49 {dimension_numbers = #tpu.dot_dimension_numbers<[1], [0], [0], [1], [0, 0, 1, 1], [], []>} : vector<16x72xbf16>, vector<72x384xbf16>, vector<16x384xf32> -> vector<16x384xf32>
    %42 = vector.broadcast %30 : vector<16x1xf32> to vector<16x384xf32>
    %43 = arith.addf %41, %42 : vector<16x384xf32>
    %cst_50 = arith.constant 0.000000e+00 : f32
    %44 = vector.broadcast %cst_50 : f32 to vector<16x384xf32>
    %45 = arith.maximumf %43, %44 : vector<16x384xf32>
    %46 = vector.broadcast %0 : vector<1x384xf32> to vector<16x384xf32>
    %47 = arith.mulf %45, %46 : vector<16x384xf32>
    %48 = arith.truncf %47 : vector<16x384xf32> to vector<16x384xbf16>
    %c0_51 = arith.constant 0 : index
    %c0_52 = arith.constant 0 : index
    %c0_53 = arith.constant 0 : index
    %49 = vector.load %arg9[%c0_51, %c0_52, %c0_53] : memref<1x16x384xbf16, #tpu.memory_space<vmem>>, vector<1x16x384xbf16>
    %50 = vector.shape_cast %49 : vector<1x16x384xbf16> to vector<16x384xbf16>
    %51 = vector.shape_cast %48 : vector<16x384xbf16> to vector<1x16x384xbf16>
    tpu.vector_store %arg9[%c0_51, %c0_52, %c0_53], %51 {strides = array<i32>} : memref<1x16x384xbf16, #tpu.memory_space<vmem>>, vector<1x16x384xbf16>,
    %52 = arith.truncf %47 : vector<16x384xf32> to vector<16x384xbf16>
    %c0_54 = arith.constant 0 : index
    %c128_55 = arith.constant 128 : index
    %53 = vector.load %arg11[%c0_54, %c128_55] : memref<32x640xbf16, #tpu.memory_space<vmem>>, vector<16x384xbf16>
    tpu.vector_store %arg11[%c0_54, %c128_55], %52 {strides = array<i32>} : memref<32x640xbf16, #tpu.memory_space<vmem>>, vector<16x384xbf16>,
    %c0_56 = arith.constant 0 : index
    %c0_57 = arith.constant 0 : index
    %54 = vector.load %arg7[%c0_56, %c0_57] : memref<32x144xbf16, #tpu.memory_space<vmem>>, vector<32x144xbf16>
    %c0_58 = arith.constant 0 : index
    %c0_59 = arith.constant 0 : index
    %55 = vector.load %arg8[%c0_58, %c0_59] : memref<32x1xf32, #tpu.memory_space<vmem>>, vector<32x1xf32>
    %c0_60 = arith.constant 0 : index
    %c103_61 = arith.constant 103 : index
    %56 = vector.load %arg11[%c0_60, %c103_61] : memref<32x640xbf16, #tpu.memory_space<vmem>>, vector<16x384xbf16>
    %c0_62 = arith.constant 0 : index
    %c104_63 = arith.constant 104 : index
    %57 = vector.load %arg11[%c0_62, %c104_63] : memref<32x640xbf16, #tpu.memory_space<vmem>>, vector<16x384xbf16>
    %c0_64 = arith.constant 0 : index
    %c105_65 = arith.constant 105 : index
    %58 = vector.load %arg11[%c0_64, %c105_65] : memref<32x640xbf16, #tpu.memory_space<vmem>>, vector<16x384xbf16>
    %c0_66 = arith.constant 0 : index
    %c127_67 = arith.constant 127 : index
    %59 = vector.load %arg11[%c0_66, %c127_67] : memref<32x640xbf16, #tpu.memory_space<vmem>>, vector<16x384xbf16>
    %c0_68 = arith.constant 0 : index
    %c128_69 = arith.constant 128 : index
    %60 = vector.load %arg11[%c0_68, %c128_69] : memref<32x640xbf16, #tpu.memory_space<vmem>>, vector<16x384xbf16>
    %c0_70 = arith.constant 0 : index
    %c129_71 = arith.constant 129 : index
    %61 = vector.load %arg11[%c0_70, %c129_71] : memref<32x640xbf16, #tpu.memory_space<vmem>>, vector<16x384xbf16>
    %c0_72 = arith.constant 0 : index
    %c151_73 = arith.constant 151 : index
    %62 = vector.load %arg11[%c0_72, %c151_73] : memref<32x640xbf16, #tpu.memory_space<vmem>>, vector<16x384xbf16>
    %c0_74 = arith.constant 0 : index
    %c152_75 = arith.constant 152 : index
    %63 = vector.load %arg11[%c0_74, %c152_75] : memref<32x640xbf16, #tpu.memory_space<vmem>>, vector<16x384xbf16>
    %c0_76 = arith.constant 0 : index
    %c153_77 = arith.constant 153 : index
    %64 = vector.load %arg11[%c0_76, %c153_77] : memref<32x640xbf16, #tpu.memory_space<vmem>>, vector<16x384xbf16>
    %65 = tpu.concatenate %56, %57, %58, %59, %60, %61, %62, %63, %64 in 0 : vector<16x384xbf16>, vector<16x384xbf16>, vector<16x384xbf16>, vector<16x384xbf16>, vector<16x384xbf16>, vector<16x384xbf16>, vector<16x384xbf16>, vector<16x384xbf16>, vector<16x384xbf16> -> vector<144x384xbf16>
    %cst_78 = arith.constant dense<0.000000e+00> : vector<32x384xf32>
    %66 = tpu.matmul %54, %65, %cst_78 {dimension_numbers = #tpu.dot_dimension_numbers<[1], [0], [0], [1], [0, 0, 1, 1], [], []>} : vector<32x144xbf16>, vector<144x384xbf16>, vector<32x384xf32> -> vector<32x384xf32>
    %67 = vector.broadcast %55 : vector<32x1xf32> to vector<32x384xf32>
    %68 = arith.addf %66, %67 : vector<32x384xf32>
    %cst_79 = arith.constant 0.000000e+00 : f32
    %69 = vector.broadcast %cst_79 : f32 to vector<32x384xf32>
    %70 = arith.maximumf %68, %69 : vector<32x384xf32>
    %71 = arith.truncf %70 : vector<32x384xf32> to vector<32x384xbf16>
    %c0_80 = arith.constant 0 : index
    %c0_81 = arith.constant 0 : index
    %c0_82 = arith.constant 0 : index
    %72 = vector.load %arg10[%c0_80, %c0_81, %c0_82] : memref<1x32x384xbf16, #tpu.memory_space<vmem>>, vector<1x32x384xbf16>
    %73 = vector.shape_cast %72 : vector<1x32x384xbf16> to vector<32x384xbf16>
    %74 = vector.shape_cast %71 : vector<32x384xbf16> to vector<1x32x384xbf16>
    tpu.vector_store %arg10[%c0_80, %c0_81, %c0_82], %74 {strides = array<i32>} : memref<1x32x384xbf16, #tpu.memory_space<vmem>>, vector<1x32x384xbf16>,
    return
  }
  func.func @transform_0(%arg0: i32) -> (i32, i32) {
    %c0_i32 = arith.constant 0 : i32
    %c0_i32_0 = arith.constant 0 : i32
    %c0_i32_1 = arith.constant 0 : i32
    return %c0_i32, %c0_i32_0 : i32, i32
  }
  func.func @transform_1(%arg0: i32) -> (i32, i32, i32) {
    %c0_i32 = arith.constant 0 : i32
    %c0_i32_0 = arith.constant 0 : i32
    %c0_i32_1 = arith.constant 0 : i32
    return %arg0, %c0_i32, %c0_i32_0 : i32, i32, i32
  }
  func.func @transform_2(%arg0: i32) -> (i32, i32) {
    %c0_i32 = arith.constant 0 : i32
    %c0_i32_0 = arith.constant 0 : i32
    %c0_i32_1 = arith.constant 0 : i32
    return %c0_i32, %c0_i32_0 : i32, i32
  }
  func.func @transform_3(%arg0: i32) -> (i32, i32) {
    %c0_i32 = arith.constant 0 : i32
    %c0_i32_0 = arith.constant 0 : i32
    %c0_i32_1 = arith.constant 0 : i32
    return %c0_i32, %c0_i32_0 : i32, i32
  }
  func.func @transform_4(%arg0: i32) -> (i32, i32) {
    %c0_i32 = arith.constant 0 : i32
    %c0_i32_0 = arith.constant 0 : i32
    %c0_i32_1 = arith.constant 0 : i32
    return %c0_i32, %c0_i32_0 : i32, i32
  }
  func.func @transform_5(%arg0: i32) -> (i32, i32) {
    %c0_i32 = arith.constant 0 : i32
    %c0_i32_0 = arith.constant 0 : i32
    %c0_i32_1 = arith.constant 0 : i32
    return %c0_i32, %c0_i32_0 : i32, i32
  }
  func.func @transform_6(%arg0: i32) -> (i32, i32) {
    %c0_i32 = arith.constant 0 : i32
    %c0_i32_0 = arith.constant 0 : i32
    %c0_i32_1 = arith.constant 0 : i32
    return %c0_i32, %c0_i32_0 : i32, i32
  }
  func.func @transform_7(%arg0: i32) -> (i32, i32) {
    %c0_i32 = arith.constant 0 : i32
    %c0_i32_0 = arith.constant 0 : i32
    %c0_i32_1 = arith.constant 0 : i32
    return %c0_i32, %c0_i32_0 : i32, i32
  }
  func.func @transform_8(%arg0: i32) -> (i32, i32, i32) {
    %c0_i32 = arith.constant 0 : i32
    %c0_i32_0 = arith.constant 0 : i32
    %c0_i32_1 = arith.constant 0 : i32
    return %arg0, %c0_i32, %c0_i32_0 : i32, i32, i32
  }
  func.func @transform_9(%arg0: i32) -> (i32, i32, i32) {
    %c0_i32 = arith.constant 0 : i32
    %c0_i32_0 = arith.constant 0 : i32
    %c0_i32_1 = arith.constant 0 : i32
    return %arg0, %c0_i32, %c0_i32_0 : i32, i32, i32
  }
}

</mosaic_0001>

<llo_original>
// kernel: _lambda_.1
$region0: #{_lambda_.1}
  #allocation0 [shape = 'u32[]', space=smem, size = 0x4, offset = 0x4, fixed_abs, tag = 'smem constant byte address 0x4 - core index']
  #allocation1 [shape = 'u32[144,128]{1,0:T(1,128)}', space=vmem, size = 0x12000, scoped, tag = 'internal scratch']
  #allocation2 [shape = 'bf16[32,640]{1,0:T(16,128)(2,1)}', space=vmem, size = 0xa000, scoped, tag = 'scratch operand']
  %s0 = inlined_call_operand.vmem [shape: f32[1,384], index: 0, kind: input, shape index: {}]
  %s1 = inlined_call_operand.vmem [shape: bf16[2,4,384], index: 1, kind: input, shape index: {}]
  %s2 = inlined_call_operand.vmem [shape: bf16[8,36], index: 2, kind: input, shape index: {}]
  %s3 = inlined_call_operand.vmem [shape: f32[8,1], index: 3, kind: input, shape index: {}]
  %s4 = inlined_call_operand.vmem [shape: bf16[16,72], index: 4, kind: input, shape index: {}]
  %s5 = inlined_call_operand.vmem [shape: f32[16,1], index: 5, kind: input, shape index: {}]
  %s6 = inlined_call_operand.vmem [shape: bf16[32,144], index: 6, kind: input, shape index: {}]
  %s7 = inlined_call_operand.vmem [shape: f32[32,1], index: 7, kind: input, shape index: {}]
  %s8 = inlined_call_operand.vmem [shape: bf16[2,16,384], index: 8, kind: output, shape index: {0}]
  %s9 = inlined_call_operand.vmem [shape: bf16[2,32,384], index: 9, kind: output, shape index: {1}]
  %10 = xla_tuple %s8, %s9
  %s11 = sld [smem:[#allocation0]]
  $region73: #{_lambda_.1} parent=0
    _
  %s13 = ssub.s32 1, %s11
  %s14 = scalar_select 0, %s13, %s11
  loop: start=0, step=1, limit=4
  $region2: #{_lambda_.1} parent=0 // loop_pre_header
    _
  $region3: #{_lambda_.1} parent=0 // loop_header
    %s16 = sphi 0, %s20
    %p17 = scmp.ge.s32.totalorder %s16, 4
    %s24 = sphi 0, %s24
    %s26 = sphi 0, %s24
    %s27 = sphi 0, %s26
    %s41 = sphi 0, %s27
    %s47 = sphi 0, %s49
    %s50 = sphi 0, %s47
    %s51 = sphi 0, %s50
    %s67 = sphi 0, %s51
    %s71 = sphi 0, %s71
    %s73 = sphi 0, %s71
    %s74 = sphi 0, %s73
    %s88 = sphi 0, %s74
    %s92 = sphi 0, %s92
    %s94 = sphi 0, %s92
    %s95 = sphi 0, %s94
    %s109 = sphi 0, %s95
    %s113 = sphi 0, %s113
    %s115 = sphi 0, %s113
    %s116 = sphi 0, %s115
    %s130 = sphi 0, %s116
    %s134 = sphi 0, %s134
    %s136 = sphi 0, %s134
    %s137 = sphi 0, %s136
    %s151 = sphi 0, %s137
    %s155 = sphi 0, %s155
    %s157 = sphi 0, %s155
    %s158 = sphi 0, %s157
    %s172 = sphi 0, %s158
    %s176 = sphi 0, %s176
    %s178 = sphi 0, %s176
    %s179 = sphi 0, %s178
    %s193 = sphi 0, %s179
    %s199 = sphi 0, %s201
    %s202 = sphi 0, %s199
    %s203 = sphi 0, %s202
    %s219 = sphi 0, %s203
    %s225 = sphi 0, %s227
    %s228 = sphi 0, %s225
    %s229 = sphi 0, %s228
    %s245 = sphi 0, %s229
  $region4: #{_lambda_.1} parent=0 // loop_header_branch
    %19 = sbr.rel (%p17) target = $region8
  $region5: #{_lambda_.1} parent=0 // loop_body
    %s21 = ssub.s32 %s16, 1
    %s22 = ssub.s32 %s16, 2
    %s23 = sadd.s32 %s16, 1
    %s25 = sadd.s32 %s24, 1
    %p28 = scmp.eq.s32.totalorder %s16, 1
    %p29 = scmp.ne.s32.totalorder %s24, %s26
    %p30 = scmp.eq.s32.totalorder %s16, 0
    %p31 = por %p29, %p30
    %p32 = scmp.ne.s32.totalorder %s24, %s26
    %p33 = scmp.eq.s32.totalorder %s21, 1
    %p34 = por %p32, %p33
    %p35 = scmp.ne.s32.totalorder %s26, %s27
    %p36 = scmp.eq.s32.totalorder %s21, 0
    %p37 = por %p35, %p36
    %p38 = scmp.ne.s32.totalorder %s26, %s27
    %p39 = scmp.eq.s32.totalorder %s22, 1
    %p40 = por %p38, %p39
    %p42 = scmp.ne.s32.totalorder %s27, %s41
    %p43 = scmp.eq.s32.totalorder %s22, 0
    %p44 = por %p42, %p43
    %s45 = ssub.s32 %s16, %s23
    %p46 = scmp.eq.s32.totalorder %s45, 0
    %s48 = sadd.s32 %s47, 1
    %s49 = scalar_select %p46, %s47, %s48
    %p52 = pneg %p46
    %p53 = scmp.eq.s32.totalorder %s16, 1
    %p54 = por %p52, %p53
    %p55 = scmp.ne.s32.totalorder %s47, %s50
    %p56 = scmp.eq.s32.totalorder %s16, 0
    %p57 = por %p55, %p56
    %p58 = scmp.ne.s32.totalorder %s47, %s50
    %p59 = scmp.eq.s32.totalorder %s21, 1
    %p60 = por %p58, %p59
    %p61 = scmp.ne.s32.totalorder %s50, %s51
    %p62 = scmp.eq.s32.totalorder %s21, 0
    %p63 = por %p61, %p62
    %p64 = scmp.ne.s32.totalorder %s50, %s51
    %p65 = scmp.eq.s32.totalorder %s22, 1
    %p66 = por %p64, %p65
    %p68 = scmp.ne.s32.totalorder %s51, %s67
    %p69 = scmp.eq.s32.totalorder %s22, 0
    %p70 = por %p68, %p69
    %s72 = sadd.s32 %s71, 1
    %p75 = scmp.eq.s32.totalorder %s16, 1
    %p76 = scmp.ne.s32.totalorder %s71, %s73
    %p77 = scmp.eq.s32.totalorder %s16, 0
    %p78 = por %p76, %p77
    %p79 = scmp.ne.s32.totalorder %s71, %s73
    %p80 = scmp.eq.s32.totalorder %s21, 1
    %p81 = por %p79, %p80
    %p82 = scmp.ne.s32.totalorder %s73, %s74
    %p83 = scmp.eq.s32.totalorder %s21, 0
    %p84 = por %p82, %p83
    %p85 = scmp.ne.s32.totalorder %s73, %s74
    %p86 = scmp.eq.s32.totalorder %s22, 1
    %p87 = por %p85, %p86
    %p89 = scmp.ne.s32.totalorder %s74, %s88
    %p90 = scmp.eq.s32.totalorder %s22, 0
    %p91 = por %p89, %p90
    %s93 = sadd.s32 %s92, 1
    %p96 = scmp.eq.s32.totalorder %s16, 1
    %p97 = scmp.ne.s32.totalorder %s92, %s94
    %p98 = scmp.eq.s32.totalorder %s16, 0
    %p99 = por %p97, %p98
    %p100 = scmp.ne.s32.totalorder %s92, %s94
    %p101 = scmp.eq.s32.totalorder %s21, 1
    %p102 = por %p100, %p101
    %p103 = scmp.ne.s32.totalorder %s94, %s95
    %p104 = scmp.eq.s32.totalorder %s21, 0
    %p105 = por %p103, %p104
    %p106 = scmp.ne.s32.totalorder %s94, %s95
    %p107 = scmp.eq.s32.totalorder %s22, 1
    %p108 = por %p106, %p107
    %p110 = scmp.ne.s32.totalorder %s95, %s109
    %p111 = scmp.eq.s32.totalorder %s22, 0
    %p112 = por %p110, %p111
    %s114 = sadd.s32 %s113, 1
    %p117 = scmp.eq.s32.totalorder %s16, 1
    %p118 = scmp.ne.s32.totalorder %s113, %s115
    %p119 = scmp.eq.s32.totalorder %s16, 0
    %p120 = por %p118, %p119
    %p121 = scmp.ne.s32.totalorder %s113, %s115
    %p122 = scmp.eq.s32.totalorder %s21, 1
    %p123 = por %p121, %p122
    %p124 = scmp.ne.s32.totalorder %s115, %s116
    %p125 = scmp.eq.s32.totalorder %s21, 0
    %p126 = por %p124, %p125
    %p127 = scmp.ne.s32.totalorder %s115, %s116
    %p128 = scmp.eq.s32.totalorder %s22, 1
    %p129 = por %p127, %p128
    %p131 = scmp.ne.s32.totalorder %s116, %s130
    %p132 = scmp.eq.s32.totalorder %s22, 0
    %p133 = por %p131, %p132
    %s135 = sadd.s32 %s134, 1
    %p138 = scmp.eq.s32.totalorder %s16, 1
    %p139 = scmp.ne.s32.totalorder %s134, %s136
    %p140 = scmp.eq.s32.totalorder %s16, 0
    %p141 = por %p139, %p140
    %p142 = scmp.ne.s32.totalorder %s134, %s136
    %p143 = scmp.eq.s32.totalorder %s21, 1
    %p144 = por %p142, %p143
    %p145 = scmp.ne.s32.totalorder %s136, %s137
    %p146 = scmp.eq.s32.totalorder %s21, 0
    %p147 = por %p145, %p146
    %p148 = scmp.ne.s32.totalorder %s136, %s137
    %p149 = scmp.eq.s32.totalorder %s22, 1
    %p150 = por %p148, %p149
    %p152 = scmp.ne.s32.totalorder %s137, %s151
    %p153 = scmp.eq.s32.totalorder %s22, 0
    %p154 = por %p152, %p153
    %s156 = sadd.s32 %s155, 1
    %p159 = scmp.eq.s32.totalorder %s16, 1
    %p160 = scmp.ne.s32.totalorder %s155, %s157
    %p161 = scmp.eq.s32.totalorder %s16, 0
    %p162 = por %p160, %p161
    %p163 = scmp.ne.s32.totalorder %s155, %s157
    %p164 = scmp.eq.s32.totalorder %s21, 1
    %p165 = por %p163, %p164
    %p166 = scmp.ne.s32.totalorder %s157, %s158
    %p167 = scmp.eq.s32.totalorder %s21, 0
    %p168 = por %p166, %p167
    %p169 = scmp.ne.s32.totalorder %s157, %s158
    %p170 = scmp.eq.s32.totalorder %s22, 1
    %p171 = por %p169, %p170
    %p173 = scmp.ne.s32.totalorder %s158, %s172
    %p174 = scmp.eq.s32.totalorder %s22, 0
    %p175 = por %p173, %p174
    %s177 = sadd.s32 %s176, 1
    %p180 = scmp.eq.s32.totalorder %s16, 1
    %p181 = scmp.ne.s32.totalorder %s176, %s178
    %p182 = scmp.eq.s32.totalorder %s16, 0
    %p183 = por %p181, %p182
    %p184 = scmp.ne.s32.totalorder %s176, %s178
    %p185 = scmp.eq.s32.totalorder %s21, 1
    %p186 = por %p184, %p185
    %p187 = scmp.ne.s32.totalorder %s178, %s179
    %p188 = scmp.eq.s32.totalorder %s21, 0
    %p189 = por %p187, %p188
    %p190 = scmp.ne.s32.totalorder %s178, %s179
    %p191 = scmp.eq.s32.totalorder %s22, 1
    %p192 = por %p190, %p191
    %p194 = scmp.ne.s32.totalorder %s179, %s193
    %p195 = scmp.eq.s32.totalorder %s22, 0
    %p196 = por %p194, %p195
    %s197 = ssub.s32 %s16, %s23
    %p198 = scmp.eq.s32.totalorder %s197, 0
    %s200 = sadd.s32 %s199, 1
    %s201 = scalar_select %p198, %s199, %s200
    %p204 = pneg %p198
    %p205 = scmp.eq.s32.totalorder %s16, 1
    %p206 = por %p204, %p205
    %p207 = scmp.ne.s32.totalorder %s199, %s202
    %p208 = scmp.eq.s32.totalorder %s16, 0
    %p209 = por %p207, %p208
    %p210 = scmp.ne.s32.totalorder %s199, %s202
    %p211 = scmp.eq.s32.totalorder %s21, 1
    %p212 = por %p210, %p211
    %p213 = scmp.ne.s32.totalorder %s202, %s203
    %p214 = scmp.eq.s32.totalorder %s21, 0
    %p215 = por %p213, %p214
    %p216 = scmp.ne.s32.totalorder %s202, %s203
    %p217 = scmp.eq.s32.totalorder %s22, 1
    %p218 = por %p216, %p217
    %p220 = scmp.ne.s32.totalorder %s203, %s219
    %p221 = scmp.eq.s32.totalorder %s22, 0
    %p222 = por %p220, %p221
    %s223 = ssub.s32 %s16, %s23
    %p224 = scmp.eq.s32.totalorder %s223, 0
    %s226 = sadd.s32 %s225, 1
    %s227 = scalar_select %p224, %s225, %s226
    %p230 = pneg %p224
    %p231 = scmp.eq.s32.totalorder %s16, 1
    %p232 = por %p230, %p231
    %p233 = scmp.ne.s32.totalorder %s225, %s228
    %p234 = scmp.eq.s32.totalorder %s16, 0
    %p235 = por %p233, %p234
    %p236 = scmp.ne.s32.totalorder %s225, %s228
    %p237 = scmp.eq.s32.totalorder %s21, 1
    %p238 = por %p236, %p237
    %p239 = scmp.ne.s32.totalorder %s228, %s229
    %p240 = scmp.eq.s32.totalorder %s21, 0
    %p241 = por %p239, %p240
    %p242 = scmp.ne.s32.totalorder %s228, %s229
    %p243 = scmp.eq.s32.totalorder %s22, 1
    %p244 = por %p242, %p243
    %p246 = scmp.ne.s32.totalorder %s229, %s245
    %p247 = scmp.eq.s32.totalorder %s22, 0
    %p248 = por %p246, %p247
    %p249 = scmp.le.s32.totalorder 1, %s16
    %p250 = scmp.lt.s32.totalorder %s16, 3
    %p251 = pnand %p249, %p250
    %p252 = pneg %p251
    // Predicated region
    $region9: #{_lambda_.1} parent=5 // pred_check
      _
    $region10: #{_lambda_.1} parent=5 // pred_check_branch
      %254 = sbr.rel (%p251) target = $region12
    $region11: #{_lambda_.1} parent=5 // pred_region
      %s255 = ssub.s32 %s16, 1
      // Predicated region
      $region13: #{_lambda_.1} parent=11 // pred_check
        %p256 = pneg %p37
      $region14: #{_lambda_.1} parent=11 // pred_check_branch
        %258 = sbr.rel (%p256) target = $region16
      $region15: #{_lambda_.1} parent=11 // pred_region
        _
      $region16: #{_lambda_.1} parent=11 // pred_fallthru
        _
      // Predicated region
      $region17: #{_lambda_.1} parent=11 // pred_check
        %p259 = pneg %p84
      $region18: #{_lambda_.1} parent=11 // pred_check_branch
        %261 = sbr.rel (%p259) target = $region20
      $region19: #{_lambda_.1} parent=11 // pred_region
        _
      $region20: #{_lambda_.1} parent=11 // pred_fallthru
        _
      // Predicated region
      $region21: #{_lambda_.1} parent=11 // pred_check
        %p262 = pneg %p105
      $region22: #{_lambda_.1} parent=11 // pred_check_branch
        %264 = sbr.rel (%p262) target = $region24
      $region23: #{_lambda_.1} parent=11 // pred_region
        _
      $region24: #{_lambda_.1} parent=11 // pred_fallthru
        _
      // Predicated region
      $region25: #{_lambda_.1} parent=11 // pred_check
        %p265 = pneg %p126
      $region26: #{_lambda_.1} parent=11 // pred_check_branch
        %267 = sbr.rel (%p265) target = $region28
      $region27: #{_lambda_.1} parent=11 // pred_region
        _
      $region28: #{_lambda_.1} parent=11 // pred_fallthru
        _
      // Predicated region
      $region29: #{_lambda_.1} parent=11 // pred_check
        %p268 = pneg %p147
      $region30: #{_lambda_.1} parent=11 // pred_check_branch
        %270 = sbr.rel (%p268) target = $region32
      $region31: #{_lambda_.1} parent=11 // pred_region
        _
      $region32: #{_lambda_.1} parent=11 // pred_fallthru
        _
      // Predicated region
      $region33: #{_lambda_.1} parent=11 // pred_check
        %p271 = pneg %p168
      $region34: #{_lambda_.1} parent=11 // pred_check_branch
        %273 = sbr.rel (%p271) target = $region36
      $region35: #{_lambda_.1} parent=11 // pred_region
        _
      $region36: #{_lambda_.1} parent=11 // pred_fallthru
        _
      // Predicated region
      $region37: #{_lambda_.1} parent=11 // pred_check
        %p274 = pneg %p189
      $region38: #{_lambda_.1} parent=11 // pred_check_branch
        %276 = sbr.rel (%p274) target = $region40
      $region39: #{_lambda_.1} parent=11 // pred_region
        _
      $region40: #{_lambda_.1} parent=11 // pred_fallthru
        _
    $region12: #{_lambda_.1} parent=5 // pred_fallthru
      _
    %p277 = scmp.lt.s32.totalorder %s16, 2
    // Predicated region
    $region41: #{_lambda_.1} parent=5 // pred_check
      %p278 = pneg %p277
    $region42: #{_lambda_.1} parent=5 // pred_check_branch
      %280 = sbr.rel (%p278) target = $region44
    $region43: #{_lambda_.1} parent=5 // pred_region
      // Predicated region
      $region45: #{_lambda_.1} parent=43 // pred_check
        %p281 = pneg %p57
      $region46: #{_lambda_.1} parent=43 // pred_check_branch
        %283 = sbr.rel (%p281) target = $region48
      $region47: #{_lambda_.1} parent=43 // pred_region
        %p284 = scmp.lt.s32.totalorder %s16, 1
        %s285 = scalar_select %p284, %s16, 1
        %s286 = smul.addr %s285, 3
        %s287 = smul.addr %s286, 2
        %s288 = scalar_lea.vmem %s1, %s287
      $region48: #{_lambda_.1} parent=43 // pred_fallthru
        _
    $region44: #{_lambda_.1} parent=5 // pred_fallthru
      _
    %p289 = scmp.le.s32.totalorder 1, %s16
    %p290 = scmp.lt.s32.totalorder %s16, 3
    %p291 = pnand %p289, %p290
    %p292 = pneg %p291
    // Predicated region
    $region49: #{_lambda_.1} parent=5 // pred_check
      _
    $region50: #{_lambda_.1} parent=5 // pred_check_branch
      %294 = sbr.rel (%p291) target = $region52
    $region51: #{_lambda_.1} parent=5 // pred_region
      %s295 = ssub.s32 %s16, 1
      %p296 = pneg %p37
      %p297 = pneg %p34
      %p298 = scmp.lt.s32.totalorder %s21, 1
      %s299 = scalar_select %p298, %s21, 1
      %s300 = smul.addr %s299, 3
      %s301 = smul.addr %s300, 2
      %s302 = scalar_lea.vmem %s1, %s301
      %p303 = pneg %p63
      %p304 = pneg %p60
      %p305 = pneg %p84
      %p306 = pneg %p81
      %p307 = pneg %p105
      %p308 = pneg %p102
      %p309 = pneg %p126
      %p310 = pneg %p123
      %p311 = pneg %p147
      %p312 = pneg %p144
      %p313 = pneg %p168
      %p314 = pneg %p165
      %p315 = pneg %p189
      %p316 = pneg %p186
      %p317 = pneg %p215
      %p318 = pneg %p212
      %p319 = scmp.lt.s32.totalorder %s21, 1
      %s320 = scalar_select %p319, %s21, 1
      %s321 = smul.addr %s320, 6
      %s322 = smul.addr %s321, 4
      %s323 = scalar_lea.vmem %s8, %s322
      %p324 = pneg %p241
      %p325 = pneg %p238
      %p326 = scmp.lt.s32.totalorder %s21, 1
      %s327 = scalar_select %p326, %s21, 1
      %s328 = smul.addr %s327, 12
      %s329 = smul.addr %s328, 4
      %s330 = scalar_lea.vmem %s9, %s329
      %p331 = scmp.lt.s32.totalorder %s21, 1
      %s332 = scalar_select %p331, %s21, 1
      %s333 = smul.addr %s332, 3
      %s334 = smul.addr %s333, 2
      %s335 = scalar_lea.vmem %s1, %s334
      %p336 = scmp.lt.s32.totalorder %s21, 1
      %s337 = scalar_select %p336, %s21, 1
      %s338 = smul.addr %s337, 6
      %s339 = smul.addr %s338, 4
      %s340 = scalar_lea.vmem %s8, %s339
      %p341 = scmp.lt.s32.totalorder %s21, 1
      %s342 = scalar_select %p341, %s21, 1
      %s343 = smul.addr %s342, 12
      %s344 = smul.addr %s343, 4
      %s345 = scalar_lea.vmem %s9, %s344
      %v347 = vld [vmem:[%s0] sm:$0x7]
      %348 = vst [vmem:[#allocation2] sm:$0xff] 0
      %349 = vst [vmem:[#allocation2 + $0x28] sm:$0xff] 0
      %350 = vst [vmem:[#allocation2 + $0x20] sm:$0xff] 0
      %351 = vst [vmem:[#allocation2 + $0x48] sm:$0xff] 0
      %v352 = vld [vmem:[%s335] sm:$0x3f]
      %v354 = vcombine.high %v352, %v352
      %v356 = vunpack.c.l.s4 1983009808
      %v357 = vunpack.c.0.s8 %v356
      %v358 = vlaneseq
      %v359 = vshrl.u32 %v358, 7
      %v360 = vsub.s32 %v357, %v359
      %v361 = vrot.slane %v352, %v360
      %v363 = vunpack.c.l.s4 1983009808
      %v364 = vunpack.c.0.s8 %v363
      %v365 = vlaneseq
      %v366 = vshrl.u32 %v365, 7
      %v367 = vsub.s32 %v364, %v366
      %v368 = vrot.slane %v354, %v367
      %v369 = vcombine.high %v361, %v361
      %373 = vst [vmem:[#allocation2 + $0x8] sm:$0x3] %v361
      %374 = vst [vmem:[#allocation2 + $0x10] sm:$0x3] %v369
      %375 = vst [vmem:[#allocation2 + $0x18] sm:$0x3] %v368
      %v376 = vld [vmem:[%s2] sm:$0xf]
      %v377 = vld [vmem:[%s3] sm:$0xff]
      %v378 = vld [vmem:[#allocation2] sm:$0x3]
      %v379 = vld [vmem:[#allocation2 + $0x8] sm:$0x3]
      %v380 = vld [vmem:[#allocation2 + $0x10] sm:$0x3]
      %v381 = vld [vmem:[#allocation2 + $0x18] sm:$0x3]
      %v382 = vld [vmem:[#allocation2 + $0x20] sm:$0x3]
      %v387 = vrot.slane %v378, 6
      %v388 = vrot.slane %v379, 6
      %v389 = vrot.slane %v380, 6
      %v390 = vrot.slane %v381, 6
      %391 = vrot.lane.b32.xlu0 %v387, 127
      %v392 = vpop.permute.xlu0 %391
      %393 = vrot.lane.b32.xlu0 %v388, 127
      %v394 = vpop.permute.xlu0 %393
      %395 = vrot.lane.b32.xlu0 %v389, 127
      %v396 = vpop.permute.xlu0 %395
      %397 = vrot.lane.b32.xlu0 %v390, 127
      %v398 = vpop.permute.xlu0 %397
      %vm399 = vcmask 1039360
      %v400 = vsel %vm399, %v392, %v394
      %v401 = vsel %vm399, %v394, %v396
      %v402 = vsel %vm399, %v396, %v398
      %v403 = vrot.slane %v378, 4
      %v404 = vrot.slane %v379, 4
      %v405 = vrot.slane %v380, 4
      %v406 = vrot.slane %v381, 4
      %407 = vrot.lane.b32.xlu0 %v403, 126
      %v408 = vpop.permute.xlu0 %407
      %409 = vrot.lane.b32.xlu0 %v404, 126
      %v410 = vpop.permute.xlu0 %409
      %411 = vrot.lane.b32.xlu0 %v405, 126
      %v412 = vpop.permute.xlu0 %411
      %413 = vrot.lane.b32.xlu0 %v406, 126
      %v414 = vpop.permute.xlu0 %413
      %vm415 = vcmask 1031168
      %v416 = vsel %vm415, %v408, %v410
      %v417 = vsel %vm415, %v410, %v412
      %v418 = vsel %vm415, %v412, %v414
      %v419 = vrot.slane %v378, 2
      %v420 = vrot.slane %v379, 2
      %v421 = vrot.slane %v380, 2
      %v422 = vrot.slane %v381, 2
      %423 = vrot.lane.b32.xlu0 %v419, 104
      %v424 = vpop.permute.xlu0 %423
      %425 = vrot.lane.b32.xlu0 %v420, 104
      %v426 = vpop.permute.xlu0 %425
      %427 = vrot.lane.b32.xlu0 %v421, 104
      %v428 = vpop.permute.xlu0 %427
      %429 = vrot.lane.b32.xlu0 %v422, 104
      %v430 = vpop.permute.xlu0 %429
      %vm431 = vcmask 850944
      %v432 = vsel %vm431, %v424, %v426
      %v433 = vsel %vm431, %v426, %v428
      %v434 = vsel %vm431, %v428, %v430
      %435 = vrot.lane.b32.xlu0 %v379, 103
      %v436 = vpop.permute.xlu0 %435
      %437 = vrot.lane.b32.xlu0 %v380, 103
      %v438 = vpop.permute.xlu0 %437
      %439 = vrot.lane.b32.xlu0 %v381, 103
      %v440 = vpop.permute.xlu0 %439
      %vm441 = vcmask 842752
      %v442 = vsel %vm441, %v436, %v438
      %v443 = vsel %vm441, %v438, %v440
      %v445 = vrot.slane %v382, 6
      %446 = vrot.lane.b32.xlu0 %v388, 102
      %v447 = vpop.permute.xlu0 %446
      %448 = vrot.lane.b32.xlu0 %v389, 102
      %v449 = vpop.permute.xlu0 %448
      %450 = vrot.lane.b32.xlu0 %v390, 102
      %v451 = vpop.permute.xlu0 %450
      %452 = vrot.lane.b32.xlu0 %v445, 102
      %v453 = vpop.permute.xlu0 %452
      %vm454 = vcmask 834560
      %v455 = vsel %vm454, %v447, %v449
      %v456 = vsel %vm454, %v449, %v451
      %v457 = vsel %vm454, %v451, %v453
      %v458 = vrot.slane %v382, 4
      %459 = vrot.lane.b32.xlu0 %v404, 80
      %v460 = vpop.permute.xlu0 %459
      %461 = vrot.lane.b32.xlu0 %v405, 80
      %v462 = vpop.permute.xlu0 %461
      %463 = vrot.lane.b32.xlu0 %v406, 80
      %v464 = vpop.permute.xlu0 %463
      %465 = vrot.lane.b32.xlu0 %v458, 80
      %v466 = vpop.permute.xlu0 %465
      %vm467 = vcmask 654336
      %v468 = vsel %vm467, %v460, %v462
      %v469 = vsel %vm467, %v462, %v464
      %v470 = vsel %vm467, %v464, %v466
      %v471 = vrot.slane %v382, 2
      %472 = vrot.lane.b32.xlu0 %v420, 79
      %v473 = vpop.permute.xlu0 %472
      %474 = vrot.lane.b32.xlu0 %v421, 79
      %v475 = vpop.permute.xlu0 %474
      %476 = vrot.lane.b32.xlu0 %v422, 79
      %v477 = vpop.permute.xlu0 %476
      %478 = vrot.lane.b32.xlu0 %v471, 79
      %v479 = vpop.permute.xlu0 %478
      %vm480 = vcmask 646144
      %v481 = vsel %vm480, %v473, %v475
      %v482 = vsel %vm480, %v475, %v477
      %v483 = vsel %vm480, %v477, %v479
      %484 = vrot.lane.b32.xlu0 %v379, 78
      %v485 = vpop.permute.xlu0 %484
      %486 = vrot.lane.b32.xlu0 %v380, 78
      %v487 = vpop.permute.xlu0 %486
      %488 = vrot.lane.b32.xlu0 %v381, 78
      %v489 = vpop.permute.xlu0 %488
      %490 = vrot.lane.b32.xlu0 %v382, 78
      %v491 = vpop.permute.xlu0 %490
      %vm492 = vcmask 637952
      %v493 = vsel %vm492, %v485, %v487
      %v494 = vsel %vm492, %v487, %v489
      %v495 = vsel %vm492, %v489, %v491
      %vm496 = vcmask 1041408
      %v499 = vsel %vm496, %v378, %v400
      %v502 = vsel %vm496, %v379, %v401
      %v505 = vsel %vm496, %v380, %v402
      %v508 = vsel %vm496, %v381, %v398
      %vm509 = vcmask 1043456
      %v511 = vsel %vm509, %v499, %v416
      %v513 = vsel %vm509, %v502, %v417
      %v515 = vsel %vm509, %v505, %v418
      %v517 = vsel %vm509, %v508, %v414
      %vm518 = vcmask 1045504
      %v520 = vsel %vm518, %v511, %v432
      %v522 = vsel %vm518, %v513, %v433
      %v524 = vsel %vm518, %v515, %v434
      %v526 = vsel %vm518, %v517, %v430
      %v529 = vsel %vm496, %v436, %v447
      %v532 = vsel %vm496, %v442, %v455
      %v535 = vsel %vm496, %v443, %v456
      %v538 = vsel %vm496, %v440, %v457
      %v540 = vsel %vm509, %v529, %v460
      %v542 = vsel %vm509, %v532, %v468
      %v544 = vsel %vm509, %v535, %v469
      %v546 = vsel %vm509, %v538, %v470
      %v548 = vsel %vm518, %v540, %v473
      %v550 = vsel %vm518, %v542, %v481
      %v552 = vsel %vm518, %v544, %v482
      %v554 = vsel %vm518, %v546, %v483
      %556 = vset.pattern.permute.xlu0 0
      %557 = vperm.xlu0 %556, %v377
      %v558 = vpop.permute.xlu0 %557
      %568 = vrot.lane.b32.xlu0 %v520, 25
      %v569 = vpop.permute.xlu0 %568
      %570 = vrot.lane.b32.xlu0 %v522, 25
      %v571 = vpop.permute.xlu0 %570
      %572 = vrot.lane.b32.xlu0 %v524, 25
      %v573 = vpop.permute.xlu0 %572
      %574 = vrot.lane.b32.xlu0 %v526, 25
      %v575 = vpop.permute.xlu0 %574
      %576 = vrot.lane.b32.xlu0 %v548, 25
      %v577 = vpop.permute.xlu0 %576
      %578 = vrot.lane.b32.xlu0 %v550, 25
      %v579 = vpop.permute.xlu0 %578
      %580 = vrot.lane.b32.xlu0 %v552, 25
      %v581 = vpop.permute.xlu0 %580
      %582 = vrot.lane.b32.xlu0 %v554, 25
      %v583 = vpop.permute.xlu0 %582
      %584 = vrot.lane.b32.xlu0 %v485, 25
      %v585 = vpop.permute.xlu0 %584
      %586 = vrot.lane.b32.xlu0 %v493, 25
      %v587 = vpop.permute.xlu0 %586
      %588 = vrot.lane.b32.xlu0 %v494, 25
      %v589 = vpop.permute.xlu0 %588
      %590 = vrot.lane.b32.xlu0 %v495, 25
      %v591 = vpop.permute.xlu0 %590
      %vm592 = vcmask 203776
      %v593 = vsel %vm592, %v569, %v571
      %v594 = vsel %vm592, %v571, %v573
      %v595 = vsel %vm592, %v573, %v575
      %v596 = vsel %vm592, %v577, %v579
      %v597 = vsel %vm592, %v579, %v581
      %v598 = vsel %vm592, %v581, %v583
      %v599 = vsel %vm592, %v585, %v587
      %v600 = vsel %vm592, %v587, %v589
      %v601 = vsel %vm592, %v589, %v591
      %vm608 = vcmask 293888
      %v610 = vsel %vm608, %v376, 0
      %v613 = vsel %vm496, %v599, 0
      %v616 = vsel %vm496, %v600, 0
      %v619 = vsel %vm496, %v601, 0
      %621 = vmatprep.subr.bf16.mxu0 %v594
      %622 = vmatpush1.bf16.msra.mxu0 %v593
      %623 = vmatprep.subr.bf16.mxu0 %v597
      %624 = vmatpush1.bf16.msra.mxu0 %v596
      %625 = vmatprep.subr.bf16.mxu0 %v616
      %626 = vmatpush1.bf16.msra.mxu0 %v613
      %627 = vmatprep.subr.bf16.mxu0 0
      %628 = vmatpush1.bf16.msra.mxu0 0
      %629 = vmatprep.subr.bf16.mxu0 0
      %630 = vmatpush1.bf16.msra.mxu0 0
      %631 = vmatprep.subr.bf16.mxu0 0
      %632 = vmatpush1.bf16.msra.mxu0 0
      %633 = vmatprep.subr.bf16.mxu0 0
      %634 = vmatpush1.bf16.msra.mxu0 0
      %635 = vmatprep.subr.bf16.mxu0 0
      %636 = vmatpush1.bf16.msra.mxu0 0
      %637 = vmatprep.subr.bf16.mxu0 0
      %638 = vmatpush1.bf16.msra.mxu0 0
      %639 = vmatprep.subr.bf16.mxu0 0
      %640 = vmatpush1.bf16.msra.mxu0 0
      %641 = vmatprep.subr.bf16.mxu0 0
      %642 = vmatpush1.bf16.msra.mxu0 0
      %643 = vmatprep.subr.bf16.mxu0 0
      %644 = vmatpush1.bf16.msra.mxu0 0
      %645 = vmatprep.subr.bf16.mxu0 0
      %646 = vmatpush1.bf16.msra.mxu0 0
      %647 = vmatprep.subr.bf16.mxu0 0
      %648 = vmatpush1.bf16.msra.mxu0 0
      %649 = vmatprep.subr.bf16.mxu0 0
      %650 = vmatpush1.bf16.msra.mxu0 0
      %651 = vmatprep.subr.bf16.mxu0 0
      %652 = vmatpush1.bf16.msra.mxu0 0
      %653 = vmatprep.mubr.bf16.mxu0 0
      %654 = vmatmul.mubr.bf16.gmra.mrb[0].mxu0 %v610
      %v655 = vpop.f32.mrb[0].mxu0
      %v656 = vadd.f32 %v558, %v655
      %v657 = vpop.f32.mrb[0].mxu0
      %v658 = vadd.f32 %v558, %v657
      %v659 = vpop.f32.mrb[0].mxu0
      %v660 = vpop.f32.mrb[0].mxu0
      %661 = vdwg.mxu0
      %662 = vmatprep.subr.bf16.mxu0 0
      %663 = vmatpush1.bf16.msra.mxu0 %v595
      %664 = vmatprep.subr.bf16.mxu0 0
      %665 = vmatpush1.bf16.msra.mxu0 %v598
      %666 = vmatprep.subr.bf16.mxu0 0
      %667 = vmatpush1.bf16.msra.mxu0 %v619
      %668 = vmatprep.subr.bf16.mxu0 0
      %669 = vmatpush1.bf16.msra.mxu0 0
      %670 = vmatprep.subr.bf16.mxu0 0
      %671 = vmatpush1.bf16.msra.mxu0 0
      %672 = vmatprep.subr.bf16.mxu0 0
      %673 = vmatpush1.bf16.msra.mxu0 0
      %674 = vmatprep.subr.bf16.mxu0 0
      %675 = vmatpush1.bf16.msra.mxu0 0
      %676 = vmatprep.subr.bf16.mxu0 0
      %677 = vmatpush1.bf16.msra.mxu0 0
      %678 = vmatprep.subr.bf16.mxu0 0
      %679 = vmatpush1.bf16.msra.mxu0 0
      %680 = vmatprep.subr.bf16.mxu0 0
      %681 = vmatpush1.bf16.msra.mxu0 0
      %682 = vmatprep.subr.bf16.mxu0 0
      %683 = vmatpush1.bf16.msra.mxu0 0
      %684 = vmatprep.subr.bf16.mxu0 0
      %685 = vmatpush1.bf16.msra.mxu0 0
      %686 = vmatprep.subr.bf16.mxu0 0
      %687 = vmatpush1.bf16.msra.mxu0 0
      %688 = vmatprep.subr.bf16.mxu0 0
      %689 = vmatpush1.bf16.msra.mxu0 0
      %690 = vmatprep.subr.bf16.mxu0 0
      %691 = vmatpush1.bf16.msra.mxu0 0
      %692 = vmatprep.subr.bf16.mxu0 0
      %693 = vmatpush1.bf16.msra.mxu0 0
      %694 = vmatprep.mubr.bf16.mxu0 0
      %695 = vmatmul.mubr.bf16.gmra.mrb[0].mxu0 %v610
      %v696 = vpop.f32.mrb[0].mxu0
      %v697 = vadd.f32 %v558, %v696
      %v698 = vpop.f32.mrb[0].mxu0
      %v699 = vpop.f32.mrb[0].mxu0
      %v700 = vpop.f32.mrb[0].mxu0
      %701 = vdwg.mxu0
      %v702 = vmax.f32 %v656, 0.0
      %v703 = vmax.f32 %v658, 0.0
      %v704 = vmax.f32 %v697, 0.0
      %v706 = vlaneseq
      %v707 = vshrl.u32 %v706, 7
      %v708 = vsub.s32 0, %v707
      %v709 = vrot.slane %v347, %v708
      %v710 = vlaneseq
      %v711 = vshrl.u32 %v710, 7
      %v712 = vsub.s32 1, %v711
      %v713 = vrot.slane %v347, %v712
      %v714 = vlaneseq
      %v715 = vshrl.u32 %v714, 7
      %v716 = vsub.s32 2, %v715
      %v717 = vrot.slane %v347, %v716
      %v721 = vmul.f32 %v702, %v709
      %v722 = vmul.f32 %v703, %v713
      %v723 = vmul.f32 %v704, %v717
      %v724 = vpack.c.bf16 %v721, %v721
      %v725 = vpack.c.bf16 %v722, %v722
      %v726 = vpack.c.bf16 %v723, %v723
      %727 = vst [vmem:[#allocation2 + $0x8] sm:$0xf] %v724
      %728 = vst [vmem:[#allocation2 + $0x10] sm:$0xf] %v725
      %729 = vst [vmem:[#allocation2 + $0x18] sm:$0xf] %v726
      %v730 = vld [vmem:[%s4] sm:$0xf]
      %v731 = vld [vmem:[%s4 + $0x4] sm:$0xf]
      %v732 = vld [vmem:[%s5] sm:$0xff]
      %v733 = vld [vmem:[%s5 + $0x8] sm:$0xff]
      %v734 = vld [vmem:[#allocation2] sm:$0xf]
      %v735 = vld [vmem:[#allocation2 + $0x8] sm:$0xf]
      %v736 = vld [vmem:[#allocation2 + $0x10] sm:$0xf]
      %v737 = vld [vmem:[#allocation2 + $0x18] sm:$0xf]
      %v738 = vld [vmem:[#allocation2 + $0x20] sm:$0xf]
      %v743 = vrot.slane %v734, 4
      %v744 = vrot.slane %v735, 4
      %v745 = vrot.slane %v736, 4
      %v746 = vrot.slane %v737, 4
      %747 = vrot.lane.b32.xlu0 %v743, 127
      %v748 = vpop.permute.xlu0 %747
      %749 = vrot.lane.b32.xlu0 %v744, 127
      %v750 = vpop.permute.xlu0 %749
      %751 = vrot.lane.b32.xlu0 %v745, 127
      %v752 = vpop.permute.xlu0 %751
      %753 = vrot.lane.b32.xlu0 %v746, 127
      %v754 = vpop.permute.xlu0 %753
      %v755 = vsel %vm399, %v748, %v750
      %v756 = vsel %vm399, %v750, %v752
      %v757 = vsel %vm399, %v752, %v754
      %758 = vrot.lane.b32.xlu0 %v734, 126
      %v759 = vpop.permute.xlu0 %758
      %760 = vrot.lane.b32.xlu0 %v735, 126
      %v761 = vpop.permute.xlu0 %760
      %762 = vrot.lane.b32.xlu0 %v736, 126
      %v763 = vpop.permute.xlu0 %762
      %764 = vrot.lane.b32.xlu0 %v737, 126
      %v765 = vpop.permute.xlu0 %764
      %v766 = vsel %vm415, %v759, %v761
      %v767 = vsel %vm415, %v761, %v763
      %v768 = vsel %vm415, %v763, %v765
      %769 = vrot.lane.b32.xlu0 %v743, 104
      %v770 = vpop.permute.xlu0 %769
      %771 = vrot.lane.b32.xlu0 %v744, 104
      %v772 = vpop.permute.xlu0 %771
      %773 = vrot.lane.b32.xlu0 %v745, 104
      %v774 = vpop.permute.xlu0 %773
      %775 = vrot.lane.b32.xlu0 %v746, 104
      %v776 = vpop.permute.xlu0 %775
      %v777 = vsel %vm431, %v770, %v772
      %v778 = vsel %vm431, %v772, %v774
      %v779 = vsel %vm431, %v774, %v776
      %780 = vrot.lane.b32.xlu0 %v735, 103
      %v781 = vpop.permute.xlu0 %780
      %782 = vrot.lane.b32.xlu0 %v736, 103
      %v783 = vpop.permute.xlu0 %782
      %784 = vrot.lane.b32.xlu0 %v737, 103
      %v785 = vpop.permute.xlu0 %784
      %v786 = vsel %vm441, %v781, %v783
      %v787 = vsel %vm441, %v783, %v785
      %v789 = vrot.slane %v738, 4
      %790 = vrot.lane.b32.xlu0 %v744, 102
      %v791 = vpop.permute.xlu0 %790
      %792 = vrot.lane.b32.xlu0 %v745, 102
      %v793 = vpop.permute.xlu0 %792
      %794 = vrot.lane.b32.xlu0 %v746, 102
      %v795 = vpop.permute.xlu0 %794
      %796 = vrot.lane.b32.xlu0 %v789, 102
      %v797 = vpop.permute.xlu0 %796
      %v798 = vsel %vm454, %v791, %v793
      %v799 = vsel %vm454, %v793, %v795
      %v800 = vsel %vm454, %v795, %v797
      %801 = vrot.lane.b32.xlu0 %v735, 80
      %v802 = vpop.permute.xlu0 %801
      %803 = vrot.lane.b32.xlu0 %v736, 80
      %v804 = vpop.permute.xlu0 %803
      %805 = vrot.lane.b32.xlu0 %v737, 80
      %v806 = vpop.permute.xlu0 %805
      %807 = vrot.lane.b32.xlu0 %v738, 80
      %v808 = vpop.permute.xlu0 %807
      %v809 = vsel %vm467, %v802, %v804
      %v810 = vsel %vm467, %v804, %v806
      %v811 = vsel %vm467, %v806, %v808
      %812 = vrot.lane.b32.xlu0 %v744, 79
      %v813 = vpop.permute.xlu0 %812
      %814 = vrot.lane.b32.xlu0 %v745, 79
      %v815 = vpop.permute.xlu0 %814
      %816 = vrot.lane.b32.xlu0 %v746, 79
      %v817 = vpop.permute.xlu0 %816
      %818 = vrot.lane.b32.xlu0 %v789, 79
      %v819 = vpop.permute.xlu0 %818
      %v820 = vsel %vm480, %v813, %v815
      %v821 = vsel %vm480, %v815, %v817
      %v822 = vsel %vm480, %v817, %v819
      %823 = vrot.lane.b32.xlu0 %v735, 78
      %v824 = vpop.permute.xlu0 %823
      %825 = vrot.lane.b32.xlu0 %v736, 78
      %v826 = vpop.permute.xlu0 %825
      %827 = vrot.lane.b32.xlu0 %v737, 78
      %v828 = vpop.permute.xlu0 %827
      %829 = vrot.lane.b32.xlu0 %v738, 78
      %v830 = vpop.permute.xlu0 %829
      %v831 = vsel %vm492, %v824, %v826
      %v832 = vsel %vm492, %v826, %v828
      %v833 = vsel %vm492, %v828, %v830
      %v836 = vsel %vm509, %v734, %v755
      %v839 = vsel %vm509, %v735, %v756
      %v842 = vsel %vm509, %v736, %v757
      %v845 = vsel %vm509, %v737, %v754
      %v848 = vsel %vm509, %v766, %v777
      %v851 = vsel %vm509, %v767, %v778
      %v854 = vsel %vm509, %v768, %v779
      %v857 = vsel %vm509, %v765, %v776
      %v860 = vsel %vm509, %v781, %v791
      %v863 = vsel %vm509, %v786, %v798
      %v866 = vsel %vm509, %v787, %v799
      %v869 = vsel %vm509, %v785, %v800
      %v872 = vsel %vm509, %v802, %v813
      %v875 = vsel %vm509, %v809, %v820
      %v878 = vsel %vm509, %v810, %v821
      %v881 = vsel %vm509, %v811, %v822
      %883 = vset.pattern.permute.xlu0 0
      %884 = vperm.xlu0 %883, %v732
      %v885 = vpop.permute.xlu0 %884
      %888 = vset.pattern.permute.xlu0 0
      %889 = vperm.xlu0 %888, %v733
      %v890 = vpop.permute.xlu0 %889
      %v894 = vunpack.c.l.b16 %v730
      %v895 = vunpack.c.l.b16 %v731
      %v896 = vpack.c.b16 %v895, %v894
      %913 = vrot.lane.b32.xlu0 %v836, 25
      %v914 = vpop.permute.xlu0 %913
      %915 = vrot.lane.b32.xlu0 %v839, 25
      %v916 = vpop.permute.xlu0 %915
      %917 = vrot.lane.b32.xlu0 %v842, 25
      %v918 = vpop.permute.xlu0 %917
      %919 = vrot.lane.b32.xlu0 %v845, 25
      %v920 = vpop.permute.xlu0 %919
      %921 = vrot.lane.b32.xlu0 %v848, 25
      %v922 = vpop.permute.xlu0 %921
      %923 = vrot.lane.b32.xlu0 %v851, 25
      %v924 = vpop.permute.xlu0 %923
      %925 = vrot.lane.b32.xlu0 %v854, 25
      %v926 = vpop.permute.xlu0 %925
      %927 = vrot.lane.b32.xlu0 %v857, 25
      %v928 = vpop.permute.xlu0 %927
      %929 = vrot.lane.b32.xlu0 %v860, 25
      %v930 = vpop.permute.xlu0 %929
      %931 = vrot.lane.b32.xlu0 %v863, 25
      %v932 = vpop.permute.xlu0 %931
      %933 = vrot.lane.b32.xlu0 %v866, 25
      %v934 = vpop.permute.xlu0 %933
      %935 = vrot.lane.b32.xlu0 %v869, 25
      %v936 = vpop.permute.xlu0 %935
      %937 = vrot.lane.b32.xlu0 %v872, 25
      %v938 = vpop.permute.xlu0 %937
      %939 = vrot.lane.b32.xlu0 %v875, 25
      %v940 = vpop.permute.xlu0 %939
      %941 = vrot.lane.b32.xlu0 %v878, 25
      %v942 = vpop.permute.xlu0 %941
      %943 = vrot.lane.b32.xlu0 %v881, 25
      %v944 = vpop.permute.xlu0 %943
      %945 = vrot.lane.b32.xlu0 %v824, 25
      %v946 = vpop.permute.xlu0 %945
      %947 = vrot.lane.b32.xlu0 %v831, 25
      %v948 = vpop.permute.xlu0 %947
      %949 = vrot.lane.b32.xlu0 %v832, 25
      %v950 = vpop.permute.xlu0 %949
      %951 = vrot.lane.b32.xlu0 %v833, 25
      %v952 = vpop.permute.xlu0 %951
      %v953 = vsel %vm592, %v914, %v916
      %v954 = vsel %vm592, %v916, %v918
      %v955 = vsel %vm592, %v918, %v920
      %v956 = vsel %vm592, %v922, %v924
      %v957 = vsel %vm592, %v924, %v926
      %v958 = vsel %vm592, %v926, %v928
      %v959 = vsel %vm592, %v930, %v932
      %v960 = vsel %vm592, %v932, %v934
      %v961 = vsel %vm592, %v934, %v936
      %v962 = vsel %vm592, %v938, %v940
      %v963 = vsel %vm592, %v940, %v942
      %v964 = vsel %vm592, %v942, %v944
      %v965 = vsel %vm592, %v946, %v948
      %v966 = vsel %vm592, %v948, %v950
      %v967 = vsel %vm592, %v950, %v952
      %vm980 = vcmask 588800
      %v982 = vsel %vm980, %v896, 0
      %v985 = vsel %vm509, %v965, 0
      %v988 = vsel %vm509, %v966, 0
      %v991 = vsel %vm509, %v967, 0
      %993 = vmatprep.subr.bf16.mxu0 %v954
      %994 = vmatpush1.bf16.msra.mxu0 %v953
      %995 = vmatprep.subr.bf16.mxu0 %v957
      %996 = vmatpush1.bf16.msra.mxu0 %v956
      %997 = vmatprep.subr.bf16.mxu0 %v960
      %998 = vmatpush1.bf16.msra.mxu0 %v959
      %999 = vmatprep.subr.bf16.mxu0 %v963
      %1000 = vmatpush1.bf16.msra.mxu0 %v962
      %1001 = vmatprep.subr.bf16.mxu0 %v988
      %1002 = vmatpush1.bf16.msra.mxu0 %v985
      %1003 = vmatprep.subr.bf16.mxu0 0
      %1004 = vmatpush1.bf16.msra.mxu0 0
      %1005 = vmatprep.subr.bf16.mxu0 0
      %1006 = vmatpush1.bf16.msra.mxu0 0
      %1007 = vmatprep.subr.bf16.mxu0 0
      %1008 = vmatpush1.bf16.msra.mxu0 0
      %1009 = vmatprep.subr.bf16.mxu0 0
      %1010 = vmatpush1.bf16.msra.mxu0 0
      %1011 = vmatprep.subr.bf16.mxu0 0
      %1012 = vmatpush1.bf16.msra.mxu0 0
      %1013 = vmatprep.subr.bf16.mxu0 0
      %1014 = vmatpush1.bf16.msra.mxu0 0
      %1015 = vmatprep.subr.bf16.mxu0 0
      %1016 = vmatpush1.bf16.msra.mxu0 0
      %1017 = vmatprep.subr.bf16.mxu0 0
      %1018 = vmatpush1.bf16.msra.mxu0 0
      %1019 = vmatprep.subr.bf16.mxu0 0
      %1020 = vmatpush1.bf16.msra.mxu0 0
      %1021 = vmatprep.subr.bf16.mxu0 0
      %1022 = vmatpush1.bf16.msra.mxu0 0
      %1023 = vmatprep.subr.bf16.mxu0 0
      %1024 = vmatpush1.bf16.msra.mxu0 0
      %1025 = vmatprep.mubr.bf16.mxu0 0
      %1026 = vmatmul.mubr.bf16.gmra.mrb[0].mxu0 %v982
      %v1027 = vpop.f32.mrb[0].mxu0
      %v1028 = vadd.f32 %v885, %v1027
      %v1029 = vpop.f32.mrb[0].mxu0
      %v1030 = vadd.f32 %v885, %v1029
      %v1031 = vpop.f32.mrb[0].mxu0
      %v1032 = vadd.f32 %v890, %v1031
      %v1033 = vpop.f32.mrb[0].mxu0
      %v1034 = vadd.f32 %v890, %v1033
      %1035 = vdwg.mxu0
      %1036 = vmatprep.subr.bf16.mxu0 0
      %1037 = vmatpush1.bf16.msra.mxu0 %v955
      %1038 = vmatprep.subr.bf16.mxu0 0
      %1039 = vmatpush1.bf16.msra.mxu0 %v958
      %1040 = vmatprep.subr.bf16.mxu0 0
      %1041 = vmatpush1.bf16.msra.mxu0 %v961
      %1042 = vmatprep.subr.bf16.mxu0 0
      %1043 = vmatpush1.bf16.msra.mxu0 %v964
      %1044 = vmatprep.subr.bf16.mxu0 0
      %1045 = vmatpush1.bf16.msra.mxu0 %v991
      %1046 = vmatprep.subr.bf16.mxu0 0
      %1047 = vmatpush1.bf16.msra.mxu0 0
      %1048 = vmatprep.subr.bf16.mxu0 0
      %1049 = vmatpush1.bf16.msra.mxu0 0
      %1050 = vmatprep.subr.bf16.mxu0 0
      %1051 = vmatpush1.bf16.msra.mxu0 0
      %1052 = vmatprep.subr.bf16.mxu0 0
      %1053 = vmatpush1.bf16.msra.mxu0 0
      %1054 = vmatprep.subr.bf16.mxu0 0
      %1055 = vmatpush1.bf16.msra.mxu0 0
      %1056 = vmatprep.subr.bf16.mxu0 0
      %1057 = vmatpush1.bf16.msra.mxu0 0
      %1058 = vmatprep.subr.bf16.mxu0 0
      %1059 = vmatpush1.bf16.msra.mxu0 0
      %1060 = vmatprep.subr.bf16.mxu0 0
      %1061 = vmatpush1.bf16.msra.mxu0 0
      %1062 = vmatprep.subr.bf16.mxu0 0
      %1063 = vmatpush1.bf16.msra.mxu0 0
      %1064 = vmatprep.subr.bf16.mxu0 0
      %1065 = vmatpush1.bf16.msra.mxu0 0
      %1066 = vmatprep.subr.bf16.mxu0 0
      %1067 = vmatpush1.bf16.msra.mxu0 0
      %1068 = vmatprep.mubr.bf16.mxu0 0
      %1069 = vmatmul.mubr.bf16.gmra.mrb[0].mxu0 %v982
      %v1070 = vpop.f32.mrb[0].mxu0
      %v1071 = vadd.f32 %v885, %v1070
      %v1072 = vpop.f32.mrb[0].mxu0
      %v1073 = vpop.f32.mrb[0].mxu0
      %v1074 = vadd.f32 %v890, %v1073
      %v1075 = vpop.f32.mrb[0].mxu0
      %1076 = vdwg.mxu0
      %v1077 = vmax.f32 %v1028, 0.0
      %v1078 = vmax.f32 %v1030, 0.0
      %v1079 = vmax.f32 %v1071, 0.0
      %v1080 = vmax.f32 %v1032, 0.0
      %v1081 = vmax.f32 %v1034, 0.0
      %v1082 = vmax.f32 %v1074, 0.0
      %v1083 = vmul.f32 %v1077, %v709
      %v1084 = vmul.f32 %v1078, %v713
      %v1085 = vmul.f32 %v1079, %v717
      %v1086 = vmul.f32 %v1080, %v709
      %v1087 = vmul.f32 %v1081, %v713
      %v1088 = vmul.f32 %v1082, %v717
      %v1089 = vpack.c.bf16 %v1086, %v1083
      %v1090 = vpack.c.bf16 %v1087, %v1084
      %v1091 = vpack.c.bf16 %v1088, %v1085
      %v1095 = vunpack.c.l.b16 %v1089
      %v1096 = vunpack.c.l.b16 %v1090
      %v1097 = vunpack.c.l.b16 %v1091
      %v1098 = vunpack.c.h.b16 %v1089
      %v1099 = vunpack.c.h.b16 %v1090
      %v1100 = vunpack.c.h.b16 %v1091
      %v1101 = vpack.c.b16 %v1096, %v1095
      %v1102 = vpack.c.b16 %v1097, %v1097
      %v1103 = vpack.c.b16 %v1099, %v1098
      %v1104 = vpack.c.b16 %v1100, %v1100
      %1109 = vst [vmem:[%s340] sm:$0xff] %v1101
      %1110 = vst [vmem:[%s340 + $0x8] sm:$0xf] %v1102
      %1111 = vst [vmem:[%s340 + $0xc] sm:$0xff] %v1103
      %1112 = vst [vmem:[%s340 + $0x14] sm:$0xf] %v1104
      %1113 = vst [vmem:[#allocation2 + $0x8] sm:$0xff] %v1089
      %1114 = vst [vmem:[#allocation2 + $0x10] sm:$0xff] %v1090
      %1115 = vst [vmem:[#allocation2 + $0x18] sm:$0xff] %v1091
      %v1116 = vld [vmem:[%s6] sm:$0xff]
      %v1117 = vld [vmem:[%s6 + $0x8] sm:$0xff]
      %v1118 = vld [vmem:[%s6 + $0x10] sm:$0xff]
      %v1119 = vld [vmem:[%s6 + $0x18] sm:$0xff]
      %v1120 = vld [vmem:[%s7] sm:$0xff]
      %v1121 = vld [vmem:[%s7 + $0x8] sm:$0xff]
      %v1122 = vld [vmem:[%s7 + $0x10] sm:$0xff]
      %v1123 = vld [vmem:[%s7 + $0x18] sm:$0xff]
      %v1124 = vld [vmem:[#allocation2] sm:$0xff]
      %v1125 = vld [vmem:[#allocation2 + $0x8] sm:$0xff]
      %v1126 = vld [vmem:[#allocation2 + $0x10] sm:$0xff]
      %v1127 = vld [vmem:[#allocation2 + $0x18] sm:$0xff]
      %v1128 = vld [vmem:[#allocation2 + $0x20] sm:$0xff]
      %1133 = vrot.lane.b32.xlu0 %v1124, 127
      %v1134 = vpop.permute.xlu0 %1133
      %1135 = vrot.lane.b32.xlu0 %v1125, 127
      %v1136 = vpop.permute.xlu0 %1135
      %1137 = vrot.lane.b32.xlu0 %v1126, 127
      %v1138 = vpop.permute.xlu0 %1137
      %1139 = vrot.lane.b32.xlu0 %v1127, 127
      %v1140 = vpop.permute.xlu0 %1139
      %v1141 = vsel %vm399, %v1134, %v1136
      %v1142 = vsel %vm399, %v1136, %v1138
      %v1143 = vsel %vm399, %v1138, %v1140
      %1144 = vrot.lane.b32.xlu0 %v1124, 126
      %v1145 = vpop.permute.xlu0 %1144
      %1146 = vrot.lane.b32.xlu0 %v1125, 126
      %v1147 = vpop.permute.xlu0 %1146
      %1148 = vrot.lane.b32.xlu0 %v1126, 126
      %v1149 = vpop.permute.xlu0 %1148
      %1150 = vrot.lane.b32.xlu0 %v1127, 126
      %v1151 = vpop.permute.xlu0 %1150
      %v1152 = vsel %vm415, %v1145, %v1147
      %v1153 = vsel %vm415, %v1147, %v1149
      %v1154 = vsel %vm415, %v1149, %v1151
      %1155 = vrot.lane.b32.xlu0 %v1124, 104
      %v1156 = vpop.permute.xlu0 %1155
      %1157 = vrot.lane.b32.xlu0 %v1125, 104
      %v1158 = vpop.permute.xlu0 %1157
      %1159 = vrot.lane.b32.xlu0 %v1126, 104
      %v1160 = vpop.permute.xlu0 %1159
      %1161 = vrot.lane.b32.xlu0 %v1127, 104
      %v1162 = vpop.permute.xlu0 %1161
      %v1163 = vsel %vm431, %v1156, %v1158
      %v1164 = vsel %vm431, %v1158, %v1160
      %v1165 = vsel %vm431, %v1160, %v1162
      %1166 = vrot.lane.b32.xlu0 %v1125, 103
      %v1167 = vpop.permute.xlu0 %1166
      %1168 = vrot.lane.b32.xlu0 %v1126, 103
      %v1169 = vpop.permute.xlu0 %1168
      %1170 = vrot.lane.b32.xlu0 %v1127, 103
      %v1171 = vpop.permute.xlu0 %1170
      %v1172 = vsel %vm441, %v1167, %v1169
      %v1173 = vsel %vm441, %v1169, %v1171
      %1175 = vrot.lane.b32.xlu0 %v1125, 102
      %v1176 = vpop.permute.xlu0 %1175
      %1177 = vrot.lane.b32.xlu0 %v1126, 102
      %v1178 = vpop.permute.xlu0 %1177
      %1179 = vrot.lane.b32.xlu0 %v1127, 102
      %v1180 = vpop.permute.xlu0 %1179
      %1181 = vrot.lane.b32.xlu0 %v1128, 102
      %v1182 = vpop.permute.xlu0 %1181
      %v1183 = vsel %vm454, %v1176, %v1178
      %v1184 = vsel %vm454, %v1178, %v1180
      %v1185 = vsel %vm454, %v1180, %v1182
      %1186 = vrot.lane.b32.xlu0 %v1125, 80
      %v1187 = vpop.permute.xlu0 %1186
      %1188 = vrot.lane.b32.xlu0 %v1126, 80
      %v1189 = vpop.permute.xlu0 %1188
      %1190 = vrot.lane.b32.xlu0 %v1127, 80
      %v1191 = vpop.permute.xlu0 %1190
      %1192 = vrot.lane.b32.xlu0 %v1128, 80
      %v1193 = vpop.permute.xlu0 %1192
      %v1194 = vsel %vm467, %v1187, %v1189
      %v1195 = vsel %vm467, %v1189, %v1191
      %v1196 = vsel %vm467, %v1191, %v1193
      %1197 = vrot.lane.b32.xlu0 %v1125, 79
      %v1198 = vpop.permute.xlu0 %1197
      %1199 = vrot.lane.b32.xlu0 %v1126, 79
      %v1200 = vpop.permute.xlu0 %1199
      %1201 = vrot.lane.b32.xlu0 %v1127, 79
      %v1202 = vpop.permute.xlu0 %1201
      %1203 = vrot.lane.b32.xlu0 %v1128, 79
      %v1204 = vpop.permute.xlu0 %1203
      %v1205 = vsel %vm480, %v1198, %v1200
      %v1206 = vsel %vm480, %v1200, %v1202
      %v1207 = vsel %vm480, %v1202, %v1204
      %1208 = vrot.lane.b32.xlu0 %v1125, 78
      %v1209 = vpop.permute.xlu0 %1208
      %1210 = vrot.lane.b32.xlu0 %v1126, 78
      %v1211 = vpop.permute.xlu0 %1210
      %1212 = vrot.lane.b32.xlu0 %v1127, 78
      %v1213 = vpop.permute.xlu0 %1212
      %1214 = vrot.lane.b32.xlu0 %v1128, 78
      %v1215 = vpop.permute.xlu0 %1214
      %v1216 = vsel %vm492, %v1209, %v1211
      %v1217 = vsel %vm492, %v1211, %v1213
      %v1218 = vsel %vm492, %v1213, %v1215
      %1220 = vset.pattern.permute.xlu0 0
      %1221 = vperm.xlu0 %1220, %v1120
      %v1222 = vpop.permute.xlu0 %1221
      %1225 = vset.pattern.permute.xlu0 0
      %1226 = vperm.xlu0 %1225, %v1121
      %v1227 = vpop.permute.xlu0 %1226
      %1230 = vset.pattern.permute.xlu0 0
      %1231 = vperm.xlu0 %1230, %v1122
      %v1232 = vpop.permute.xlu0 %1231
      %1235 = vset.pattern.permute.xlu0 0
      %1236 = vperm.xlu0 %1235, %v1123
      %v1237 = vpop.permute.xlu0 %1236
      %v1243 = vunpack.c.l.b16 %v1116
      %v1244 = vunpack.c.h.b16 %v1116
      %v1245 = vunpack.c.l.b16 %v1117
      %v1246 = vunpack.c.h.b16 %v1117
      %v1247 = vunpack.c.l.b16 %v1118
      %v1248 = vunpack.c.h.b16 %v1118
      %v1249 = vunpack.c.l.b16 %v1119
      %v1250 = vunpack.c.h.b16 %v1119
      %v1251 = vpack.c.b16 %v1245, %v1243
      %v1252 = vpack.c.b16 %v1246, %v1244
      %v1253 = vpack.c.b16 %v1249, %v1247
      %v1254 = vpack.c.b16 %v1250, %v1248
      %1257 = vrot.lane.b32.xlu0 %v1124, 25
      %v1258 = vpop.permute.xlu0 %1257
      %1259 = vrot.lane.b32.xlu0 %v1125, 25
      %v1260 = vpop.permute.xlu0 %1259
      %1261 = vrot.lane.b32.xlu0 %v1126, 25
      %v1262 = vpop.permute.xlu0 %1261
      %1263 = vrot.lane.b32.xlu0 %v1127, 25
      %v1264 = vpop.permute.xlu0 %1263
      %1265 = vrot.lane.b32.xlu0 %v1141, 25
      %v1266 = vpop.permute.xlu0 %1265
      %1267 = vrot.lane.b32.xlu0 %v1142, 25
      %v1268 = vpop.permute.xlu0 %1267
      %1269 = vrot.lane.b32.xlu0 %v1143, 25
      %v1270 = vpop.permute.xlu0 %1269
      %1271 = vrot.lane.b32.xlu0 %v1140, 25
      %v1272 = vpop.permute.xlu0 %1271
      %1273 = vrot.lane.b32.xlu0 %v1152, 25
      %v1274 = vpop.permute.xlu0 %1273
      %1275 = vrot.lane.b32.xlu0 %v1153, 25
      %v1276 = vpop.permute.xlu0 %1275
      %1277 = vrot.lane.b32.xlu0 %v1154, 25
      %v1278 = vpop.permute.xlu0 %1277
      %1279 = vrot.lane.b32.xlu0 %v1151, 25
      %v1280 = vpop.permute.xlu0 %1279
      %1281 = vrot.lane.b32.xlu0 %v1163, 25
      %v1282 = vpop.permute.xlu0 %1281
      %1283 = vrot.lane.b32.xlu0 %v1164, 25
      %v1284 = vpop.permute.xlu0 %1283
      %1285 = vrot.lane.b32.xlu0 %v1165, 25
      %v1286 = vpop.permute.xlu0 %1285
      %1287 = vrot.lane.b32.xlu0 %v1162, 25
      %v1288 = vpop.permute.xlu0 %1287
      %1289 = vrot.lane.b32.xlu0 %v1167, 25
      %v1290 = vpop.permute.xlu0 %1289
      %1291 = vrot.lane.b32.xlu0 %v1172, 25
      %v1292 = vpop.permute.xlu0 %1291
      %1293 = vrot.lane.b32.xlu0 %v1173, 25
      %v1294 = vpop.permute.xlu0 %1293
      %1295 = vrot.lane.b32.xlu0 %v1171, 25
      %v1296 = vpop.permute.xlu0 %1295
      %1297 = vrot.lane.b32.xlu0 %v1176, 25
      %v1298 = vpop.permute.xlu0 %1297
      %1299 = vrot.lane.b32.xlu0 %v1183, 25
      %v1300 = vpop.permute.xlu0 %1299
      %1301 = vrot.lane.b32.xlu0 %v1184, 25
      %v1302 = vpop.permute.xlu0 %1301
      %1303 = vrot.lane.b32.xlu0 %v1185, 25
      %v1304 = vpop.permute.xlu0 %1303
      %1305 = vrot.lane.b32.xlu0 %v1187, 25
      %v1306 = vpop.permute.xlu0 %1305
      %1307 = vrot.lane.b32.xlu0 %v1194, 25
      %v1308 = vpop.permute.xlu0 %1307
      %1309 = vrot.lane.b32.xlu0 %v1195, 25
      %v1310 = vpop.permute.xlu0 %1309
      %1311 = vrot.lane.b32.xlu0 %v1196, 25
      %v1312 = vpop.permute.xlu0 %1311
      %1313 = vrot.lane.b32.xlu0 %v1198, 25
      %v1314 = vpop.permute.xlu0 %1313
      %1315 = vrot.lane.b32.xlu0 %v1205, 25
      %v1316 = vpop.permute.xlu0 %1315
      %1317 = vrot.lane.b32.xlu0 %v1206, 25
      %v1318 = vpop.permute.xlu0 %1317
      %1319 = vrot.lane.b32.xlu0 %v1207, 25
      %v1320 = vpop.permute.xlu0 %1319
      %1321 = vrot.lane.b32.xlu0 %v1209, 25
      %v1322 = vpop.permute.xlu0 %1321
      %1323 = vrot.lane.b32.xlu0 %v1216, 25
      %v1324 = vpop.permute.xlu0 %1323
      %1325 = vrot.lane.b32.xlu0 %v1217, 25
      %v1326 = vpop.permute.xlu0 %1325
      %1327 = vrot.lane.b32.xlu0 %v1218, 25
      %v1328 = vpop.permute.xlu0 %1327
      %v1329 = vsel %vm592, %v1258, %v1260
      %v1330 = vsel %vm592, %v1260, %v1262
      %v1331 = vsel %vm592, %v1262, %v1264
      %v1332 = vsel %vm592, %v1266, %v1268
      %v1333 = vsel %vm592, %v1268, %v1270
      %v1334 = vsel %vm592, %v1270, %v1272
      %v1335 = vsel %vm592, %v1274, %v1276
      %v1336 = vsel %vm592, %v1276, %v1278
      %v1337 = vsel %vm592, %v1278, %v1280
      %v1338 = vsel %vm592, %v1282, %v1284
      %v1339 = vsel %vm592, %v1284, %v1286
      %v1340 = vsel %vm592, %v1286, %v1288
      %v1341 = vsel %vm592, %v1290, %v1292
      %v1342 = vsel %vm592, %v1292, %v1294
      %v1343 = vsel %vm592, %v1294, %v1296
      %v1344 = vsel %vm592, %v1298, %v1300
      %v1345 = vsel %vm592, %v1300, %v1302
      %v1346 = vsel %vm592, %v1302, %v1304
      %v1347 = vsel %vm592, %v1306, %v1308
      %v1348 = vsel %vm592, %v1308, %v1310
      %v1349 = vsel %vm592, %v1310, %v1312
      %v1350 = vsel %vm592, %v1314, %v1316
      %v1351 = vsel %vm592, %v1316, %v1318
      %v1352 = vsel %vm592, %v1318, %v1320
      %v1353 = vsel %vm592, %v1322, %v1324
      %v1354 = vsel %vm592, %v1324, %v1326
      %v1355 = vsel %vm592, %v1326, %v1328
      %vm1383 = vcmask 130048
      %v1385 = vsel %vm1383, %v1252, 0
      %v1388 = vsel %vm1383, %v1254, 0
      %1390 = vmatprep.subr.bf16.mxu0 %v1330
      %1391 = vmatpush1.bf16.msra.mxu0 %v1329
      %1392 = vmatprep.subr.bf16.mxu0 %v1333
      %1393 = vmatpush1.bf16.msra.mxu0 %v1332
      %1394 = vmatprep.subr.bf16.mxu0 %v1336
      %1395 = vmatpush1.bf16.msra.mxu0 %v1335
      %1396 = vmatprep.subr.bf16.mxu0 %v1339
      %1397 = vmatpush1.bf16.msra.mxu0 %v1338
      %1398 = vmatprep.subr.bf16.mxu0 %v1342
      %1399 = vmatpush1.bf16.msra.mxu0 %v1341
      %1400 = vmatprep.subr.bf16.mxu0 %v1345
      %1401 = vmatpush1.bf16.msra.mxu0 %v1344
      %1402 = vmatprep.subr.bf16.mxu0 %v1348
      %1403 = vmatpush1.bf16.msra.mxu0 %v1347
      %1404 = vmatprep.subr.bf16.mxu0 %v1351
      %1405 = vmatpush1.bf16.msra.mxu0 %v1350
      %1406 = vmatprep.subr.bf16.mxu0 %v1354
      %1407 = vmatpush1.bf16.msra.mxu0 %v1353
      %1408 = vmatprep.subr.bf16.mxu0 0
      %1409 = vmatpush1.bf16.msra.mxu0 0
      %1410 = vmatprep.subr.bf16.mxu0 0
      %1411 = vmatpush1.bf16.msra.mxu0 0
      %1412 = vmatprep.subr.bf16.mxu0 0
      %1413 = vmatpush1.bf16.msra.mxu0 0
      %1414 = vmatprep.subr.bf16.mxu0 0
      %1415 = vmatpush1.bf16.msra.mxu0 0
      %1416 = vmatprep.subr.bf16.mxu0 0
      %1417 = vmatpush1.bf16.msra.mxu0 0
      %1418 = vmatprep.subr.bf16.mxu0 0
      %1419 = vmatpush1.bf16.msra.mxu0 0
      %1420 = vmatprep.subr.bf16.mxu0 0
      %1421 = vmatpush1.bf16.msra.mxu0 0
      %1422 = vmatprep.mubr.bf16.mxu0 %v1385
      %1423 = vmatmul.mubr.bf16.gmra.mrb[0].mxu0 %v1251
      %v1424 = vpop.f32.mrb[0].mxu0
      %v1425 = vadd.f32 %v1222, %v1424
      %v1426 = vpop.f32.mrb[0].mxu0
      %v1427 = vadd.f32 %v1222, %v1426
      %v1428 = vpop.f32.mrb[0].mxu0
      %v1429 = vadd.f32 %v1227, %v1428
      %v1430 = vpop.f32.mrb[0].mxu0
      %v1431 = vadd.f32 %v1227, %v1430
      %1432 = vmatprep.mubr.bf16.mxu0 %v1388
      %1433 = vmatmul.mubr.bf16.gmra.mrb[0].mxu0 %v1253
      %v1434 = vpop.f32.mrb[0].mxu0
      %v1435 = vadd.f32 %v1232, %v1434
      %v1436 = vpop.f32.mrb[0].mxu0
      %v1437 = vadd.f32 %v1232, %v1436
      %v1438 = vpop.f32.mrb[0].mxu0
      %v1439 = vadd.f32 %v1237, %v1438
      %v1440 = vpop.f32.mrb[0].mxu0
      %v1441 = vadd.f32 %v1237, %v1440
      %1442 = vdwg.mxu0
      %1443 = vmatprep.subr.bf16.mxu0 0
      %1444 = vmatpush1.bf16.msra.mxu0 %v1331
      %1445 = vmatprep.subr.bf16.mxu0 0
      %1446 = vmatpush1.bf16.msra.mxu0 %v1334
      %1447 = vmatprep.subr.bf16.mxu0 0
      %1448 = vmatpush1.bf16.msra.mxu0 %v1337
      %1449 = vmatprep.subr.bf16.mxu0 0
      %1450 = vmatpush1.bf16.msra.mxu0 %v1340
      %1451 = vmatprep.subr.bf16.mxu0 0
      %1452 = vmatpush1.bf16.msra.mxu0 %v1343
      %1453 = vmatprep.subr.bf16.mxu0 0
      %1454 = vmatpush1.bf16.msra.mxu0 %v1346
      %1455 = vmatprep.subr.bf16.mxu0 0
      %1456 = vmatpush1.bf16.msra.mxu0 %v1349
      %1457 = vmatprep.subr.bf16.mxu0 0
      %1458 = vmatpush1.bf16.msra.mxu0 %v1352
      %1459 = vmatprep.subr.bf16.mxu0 0
      %1460 = vmatpush1.bf16.msra.mxu0 %v1355
      %1461 = vmatprep.subr.bf16.mxu0 0
      %1462 = vmatpush1.bf16.msra.mxu0 0
      %1463 = vmatprep.subr.bf16.mxu0 0
      %1464 = vmatpush1.bf16.msra.mxu0 0
      %1465 = vmatprep.subr.bf16.mxu0 0
      %1466 = vmatpush1.bf16.msra.mxu0 0
      %1467 = vmatprep.subr.bf16.mxu0 0
      %1468 = vmatpush1.bf16.msra.mxu0 0
      %1469 = vmatprep.subr.bf16.mxu0 0
      %1470 = vmatpush1.bf16.msra.mxu0 0
      %1471 = vmatprep.subr.bf16.mxu0 0
      %1472 = vmatpush1.bf16.msra.mxu0 0
      %1473 = vmatprep.subr.bf16.mxu0 0
      %1474 = vmatpush1.bf16.msra.mxu0 0
      %1475 = vmatprep.mubr.bf16.mxu0 %v1385
      %1476 = vmatmul.mubr.bf16.gmra.mrb[0].mxu0 %v1251
      %v1477 = vpop.f32.mrb[0].mxu0
      %v1478 = vadd.f32 %v1222, %v1477
      %v1479 = vpop.f32.mrb[0].mxu0
      %v1480 = vpop.f32.mrb[0].mxu0
      %v1481 = vadd.f32 %v1227, %v1480
      %v1482 = vpop.f32.mrb[0].mxu0
      %1483 = vmatprep.mubr.bf16.mxu0 %v1388
      %1484 = vmatmul.mubr.bf16.gmra.mrb[0].mxu0 %v1253
      %v1485 = vpop.f32.mrb[0].mxu0
      %v1486 = vadd.f32 %v1232, %v1485
      %v1487 = vpop.f32.mrb[0].mxu0
      %v1488 = vpop.f32.mrb[0].mxu0
      %v1489 = vadd.f32 %v1237, %v1488
      %v1490 = vpop.f32.mrb[0].mxu0
      %1491 = vdwg.mxu0
      %v1492 = vmax.f32 %v1425, 0.0
      %v1493 = vmax.f32 %v1427, 0.0
      %v1494 = vmax.f32 %v1478, 0.0
      %v1495 = vmax.f32 %v1429, 0.0
      %v1496 = vmax.f32 %v1431, 0.0
      %v1497 = vmax.f32 %v1481, 0.0
      %v1498 = vmax.f32 %v1435, 0.0
      %v1499 = vmax.f32 %v1437, 0.0
      %v1500 = vmax.f32 %v1486, 0.0
      %v1501 = vmax.f32 %v1439, 0.0
      %v1502 = vmax.f32 %v1441, 0.0
      %v1503 = vmax.f32 %v1489, 0.0
      %v1504 = vpack.c.bf16 %v1495, %v1492
      %v1505 = vpack.c.bf16 %v1496, %v1493
      %v1506 = vpack.c.bf16 %v1497, %v1494
      %v1507 = vpack.c.bf16 %v1501, %v1498
      %v1508 = vpack.c.bf16 %v1502, %v1499
      %v1509 = vpack.c.bf16 %v1503, %v1500
      %v1516 = vunpack.c.l.b16 %v1504
      %v1517 = vunpack.c.l.b16 %v1505
      %v1518 = vunpack.c.l.b16 %v1506
      %v1519 = vunpack.c.h.b16 %v1504
      %v1520 = vunpack.c.h.b16 %v1505
      %v1521 = vunpack.c.h.b16 %v1506
      %v1522 = vunpack.c.l.b16 %v1507
      %v1523 = vunpack.c.l.b16 %v1508
      %v1524 = vunpack.c.l.b16 %v1509
      %v1525 = vunpack.c.h.b16 %v1507
      %v1526 = vunpack.c.h.b16 %v1508
      %v1527 = vunpack.c.h.b16 %v1509
      %v1528 = vpack.c.b16 %v1517, %v1516
      %v1529 = vpack.c.b16 %v1518, %v1518
      %v1530 = vpack.c.b16 %v1520, %v1519
      %v1531 = vpack.c.b16 %v1521, %v1521
      %v1532 = vpack.c.b16 %v1523, %v1522
      %v1533 = vpack.c.b16 %v1524, %v1524
      %v1534 = vpack.c.b16 %v1526, %v1525
      %v1535 = vpack.c.b16 %v1527, %v1527
      %1544 = vst [vmem:[%s345] sm:$0xff] %v1528
      %1545 = vst [vmem:[%s345 + $0x8] sm:$0xf] %v1529
      %1546 = vst [vmem:[%s345 + $0xc] sm:$0xff] %v1530
      %1547 = vst [vmem:[%s345 + $0x14] sm:$0xf] %v1531
      %1548 = vst [vmem:[%s345 + $0x18] sm:$0xff] %v1532
      %1549 = vst [vmem:[%s345 + $0x20] sm:$0xf] %v1533
      %1550 = vst [vmem:[%s345 + $0x24] sm:$0xff] %v1534
      %1551 = vst [vmem:[%s345 + $0x2c] sm:$0xf] %v1535
      %p1552 = scmp.lt.s32.totalorder %s21, 1
      %s1553 = scalar_select %p1552, %s21, 1
      %s1554 = smul.addr %s1553, 6
      %s1555 = smul.addr %s1554, 4
      %s1556 = scalar_lea.vmem %s8, %s1555
      %p1557 = scmp.lt.s32.totalorder %s21, 1
      %s1558 = scalar_select %p1557, %s21, 1
      %s1559 = smul.addr %s1558, 12
      %s1560 = smul.addr %s1559, 4
      %s1561 = scalar_lea.vmem %s9, %s1560
      // Predicated region
      $region53: #{_lambda_.1} parent=51 // pred_check
        %p1562 = pneg %p212
      $region54: #{_lambda_.1} parent=51 // pred_check_branch
        %1564 = sbr.rel (%p1562) target = $region56
      $region55: #{_lambda_.1} parent=51 // pred_region
        _
      $region56: #{_lambda_.1} parent=51 // pred_fallthru
        _
      // Predicated region
      $region57: #{_lambda_.1} parent=51 // pred_check
        %p1565 = pneg %p238
      $region58: #{_lambda_.1} parent=51 // pred_check_branch
        %1567 = sbr.rel (%p1565) target = $region60
      $region59: #{_lambda_.1} parent=51 // pred_region
        _
      $region60: #{_lambda_.1} parent=51 // pred_fallthru
        _
    $region52: #{_lambda_.1} parent=5 // pred_fallthru
      _
    %p1568 = scmp.le.s32.totalorder 2, %s16
    // Predicated region
    $region61: #{_lambda_.1} parent=5 // pred_check
      %p1569 = pneg %p1568
    $region62: #{_lambda_.1} parent=5 // pred_check_branch
      %1571 = sbr.rel (%p1569) target = $region64
    $region63: #{_lambda_.1} parent=5 // pred_region
      %s1572 = ssub.s32 %s16, 2
      // Predicated region
      $region65: #{_lambda_.1} parent=63 // pred_check
        %p1573 = pneg %p218
      $region66: #{_lambda_.1} parent=63 // pred_check_branch
        %1575 = sbr.rel (%p1573) target = $region68
      $region67: #{_lambda_.1} parent=63 // pred_region
        %p1576 = scmp.lt.s32.totalorder %s22, 1
        %s1577 = scalar_select %p1576, %s22, 1
        %s1578 = smul.addr %s1577, 6
        %s1579 = smul.addr %s1578, 4
        %s1580 = scalar_lea.vmem %s8, %s1579
      $region68: #{_lambda_.1} parent=63 // pred_fallthru
        _
      // Predicated region
      $region69: #{_lambda_.1} parent=63 // pred_check
        %p1581 = pneg %p244
      $region70: #{_lambda_.1} parent=63 // pred_check_branch
        %1583 = sbr.rel (%p1581) target = $region72
      $region71: #{_lambda_.1} parent=63 // pred_region
        %p1584 = scmp.lt.s32.totalorder %s22, 1
        %s1585 = scalar_select %p1584, %s22, 1
        %s1586 = smul.addr %s1585, 12
        %s1587 = smul.addr %s1586, 4
        %s1588 = scalar_lea.vmem %s9, %s1587
      $region72: #{_lambda_.1} parent=63 // pred_fallthru
        _
    $region64: #{_lambda_.1} parent=5 // pred_fallthru
      _
  $region6: #{_lambda_.1} parent=0 // loop_footer
    %s20 = sadd.s32 1, %s16
  $region7: #{_lambda_.1} parent=0 // loop_footer_branch
    %15 = sbr.rel target = $region3
  $region8: #{_lambda_.1} parent=0 // loop_exit
    _

</llo_original>
